<compile_context>
chip_gen: v5e
topology: v5e:2x2
jax: 0.10.0
libtpu: 0.0.40
codegen_flags: <defaults>
</compile_context>

<pallas_src>
import functools

import jax
import jax.numpy as jnp
from jax.experimental import pallas as pl
from jax.experimental.pallas import tpu as pltpu


# ----------------------------- Pallas kernels ------------------------------

def conv_bn_relu_pool_kernel(p_ref, w_ref, b_ref, o_ref):
    """Fused conv(im2col matmul) + folded BN/bias + ReLU + 2x2 max-pool.

    p_ref: (4, TM, Kd)  bf16  -- the 4 pooling taps for TM pooled output rows
    w_ref: (Kd, Cout)   bf16  -- conv weight with BN scale folded in
    b_ref: (1, Cout)    f32   -- conv bias + BN shift folded
    o_ref: (TM, Cout)   bf16
    """
    w = w_ref[...]
    z0 = jnp.dot(p_ref[0], w, preferred_element_type=jnp.float32)
    z1 = jnp.dot(p_ref[1], w, preferred_element_type=jnp.float32)
    z2 = jnp.dot(p_ref[2], w, preferred_element_type=jnp.float32)
    z3 = jnp.dot(p_ref[3], w, preferred_element_type=jnp.float32)
    # bias is shared across taps and ReLU is monotone, so pooling before
    # bias+ReLU is exact.
    z = jnp.maximum(jnp.maximum(z0, z1), jnp.maximum(z2, z3)) + b_ref[...]
    o_ref[...] = jnp.maximum(z, 0.0).astype(o_ref.dtype)


def fc_head_kernel(x_ref, w1_ref, b1_ref, w2_ref, b2_ref, o_ref):
    """Fused fc1 + ReLU + fc2 + log_softmax; hidden stays in VMEM/registers."""
    h = jnp.dot(x_ref[...], w1_ref[...],
                preferred_element_type=jnp.float32) + b1_ref[...]
    h = jnp.maximum(h, 0.0)
    z = jnp.dot(h, w2_ref[...],
                preferred_element_type=jnp.float32) + b2_ref[...]
    m = jnp.max(z, axis=-1, keepdims=True)
    lse = jnp.log(jnp.sum(jnp.exp(z - m), axis=-1, keepdims=True)) + m
    o_ref[...] = z - lse


# ------------------------------- call wrappers ------------------------------

_VMEM_LIMIT = 32 * 1024 * 1024  # safe on v5e/v6e (128 MiB) and v7x (64 MiB)


def _round_up(x, m):
    return ((x + m - 1) // m) * m


def _pick_tile(m, target=1024):
    """Largest aligned divisor of m that is <= target (falls back to m)."""
    if m <= target:
        return m
    for align in (16, 8):
        t = target - (target % align)
        while t >= align:
            if m % t == 0:
                return t
            t -= align
    return m


def conv_bn_relu_pool(patches, w, b, out_dtype=jnp.bfloat16):
    """patches: (4, Mq, Kd), w: (Kd, Cout), b: (1, Cout) -> (Mq, Cout)."""
    _, mq, kd = patches.shape
    cout = w.shape[1]
    tm = _pick_tile(mq)
    return pl.pallas_call(
        conv_bn_relu_pool_kernel,
        out_shape=jax.ShapeDtypeStruct((mq, cout), out_dtype),
        grid=(mq // tm,),
        in_specs=[
            pl.BlockSpec((4, tm, kd), lambda i: (0, i, 0)),   # streamed patches
            pl.BlockSpec((kd, cout), lambda i: (0, 0)),       # VMEM-resident weight
            pl.BlockSpec((1, cout), lambda i: (0, 0)),        # VMEM-resident bias
        ],
        out_specs=pl.BlockSpec((tm, cout), lambda i: (i, 0)),
        compiler_params=pltpu.CompilerParams(
            dimension_semantics=("parallel",),
            vmem_limit_bytes=_VMEM_LIMIT),
    )(patches, w, b)


def fc_head(feat, w1, b1, w2, b2):
    n, d = feat.shape
    hdim = w1.shape[1]
    odim = w2.shape[1]
    tn = _pick_tile(n, target=256)
    return pl.pallas_call(
        fc_head_kernel,
        out_shape=jax.ShapeDtypeStruct((n, odim), jnp.float32),
        grid=(n // tn,),
        in_specs=[
            pl.BlockSpec((tn, d), lambda i: (i, 0)),
            pl.BlockSpec((d, hdim), lambda i: (0, 0)),
            pl.BlockSpec((1, hdim), lambda i: (0, 0)),
            pl.BlockSpec((hdim, odim), lambda i: (0, 0)),
            pl.BlockSpec((1, odim), lambda i: (0, 0)),
        ],
        out_specs=pl.BlockSpec((tn, odim), lambda i: (i, 0)),
        compiler_params=pltpu.CompilerParams(
            dimension_semantics=("parallel",),
            vmem_limit_bytes=_VMEM_LIMIT),
    )(feat, w1, b1, w2, b2)


# ------------------------------- glue (JAX) --------------------------------

def _im2col_pooled(x_nhwc, k, pad, kd_pad):
    """Tap-major im2col for fused conv+pool.

    Returns (4, N*Ho*Wo, kd_pad): for tap t = 2*dy+dx, row (n, yo, xo) holds the
    k*k*C patch of conv-output position (2*yo+dy, 2*xo+dx).
    """
    n, h, w, c = x_nhwc.shape
    xp = jnp.pad(x_nhwc, ((0, 0), (pad, pad), (pad, pad), (0, 0)))
    ho, wo = h // 2, w // 2
    taps = []
    for dy in range(2):
        for dx in range(2):
            cols = [xp[:, dy + ky: dy + ky + h: 2, dx + kx: dx + kx + w: 2, :]
                    for ky in range(k) for kx in range(k)]
            taps.append(jnp.concatenate(cols, axis=-1).reshape(n * ho * wo, k * k * c))
    p = jnp.stack(taps, axis=0)                       # (4, N*Ho*Wo, k*k*C)
    kd = k * k * c
    if kd_pad > kd:
        p = jnp.pad(p, ((0, 0), (0, 0), (0, kd_pad - kd)))
    return p


# ------------------------------ parameters ---------------------------------

def init_params(key, cin=3, height=16, width=16):
    """PyTorch-layout parameters for Net (scaled down spatially)."""
    c1 = 8 * cin           # out_channels_1
    c2 = 2 * c1            # out_channels_2
    d_fc = c2 * (height // 4) * (width // 4)
    ks = jax.random.split(key, 16)

    def u(k, shape, scale=0.1):
        return jax.random.uniform(k, shape, jnp.float32, -1.0, 1.0) * scale

    return {
        "conv1_w": u(ks[0], (c1, cin, 5, 5)),        # (Cout, Cin, Kh, Kw)
        "conv1_b": u(ks[1], (c1,)),
        "bn1_gamma": 1.0 + u(ks[2], (c1,)),
        "bn1_beta": u(ks[3], (c1,)),
        "bn1_mean": u(ks[4], (c1,)),
        "bn1_var": 1.0 + jnp.abs(u(ks[5], (c1,), 0.2)),
        "conv2_w": u(ks[6], (c2, c1, 3, 3)),
        "conv2_b": u(ks[7], (c2,)),
        "bn2_gamma": 1.0 + u(ks[8], (c2,)),
        "bn2_beta": u(ks[9], (c2,)),
        "bn2_mean": u(ks[10], (c2,)),
        "bn2_var": 1.0 + jnp.abs(u(ks[11], (c2,), 0.2)),
        "fc1_w": u(ks[12], (d_fc, 128), 0.05),       # stored (in, out)
        "fc1_b": u(ks[13], (128,)),
        "fc2_w": u(ks[14], (128, 10), 0.05),
        "fc2_b": u(ks[15], (10,)),
    }


def prepare_params(params, eps=1e-5):
    """One-time folding / layout conversion into kernel-ready tensors."""

    def fold_conv(w_ochw, b_conv, gamma, beta, mean, var):
        cout = w_ochw.shape[0]
        s = gamma / jnp.sqrt(var + eps)                       # BN scale
        w = jnp.transpose(w_ochw, (2, 3, 1, 0)).reshape(-1, cout)  # (k*k*cin, cout)
        w = w * s[None, :]                                    # fold BN scale into weight
        b = b_conv * s + beta - mean * s                      # fold bias + BN shift
        kd = w.shape[0]
        kd_pad = _round_up(kd, 8)                             # sublane-friendly K dim
        if kd_pad > kd:
            w = jnp.pad(w, ((0, kd_pad - kd), (0, 0)))
        return w.astype(jnp.bfloat16), b[None, :].astype(jnp.float32)

    w1, b1 = fold_conv(params["conv1_w"], params["conv1_b"],
                       params["bn1_gamma"], params["bn1_beta"],
                       params["bn1_mean"], params["bn1_var"])
    w2, b2 = fold_conv(params["conv2_w"], params["conv2_b"],
                       params["bn2_gamma"], params["bn2_beta"],
                       params["bn2_mean"], params["bn2_var"])

    # Permute fc1 rows from PyTorch NCHW flatten order (c, y, x) to our NHWC
    # flatten order (y, x, c) so no activation transpose is needed per forward.
    c2 = params["conv2_w"].shape[0]
    d_fc, hdim = params["fc1_w"].shape
    hw = d_fc // c2
    fc1_w = params["fc1_w"].reshape(c2, hw, hdim).transpose(1, 0, 2).reshape(d_fc, hdim)

    return {
        "conv1_w": w1, "conv1_b": b1,
        "conv2_w": w2, "conv2_b": b2,
        "fc1_w": fc1_w.astype(jnp.bfloat16),
        "fc1_b": params["fc1_b"][None, :].astype(jnp.float32),
        "fc2_w": params["fc2_w"].astype(jnp.float32),          # tiny; keep f32
        "fc2_b": params["fc2_b"][None, :].astype(jnp.float32),
    }


# -------------------------------- forward ----------------------------------

@jax.jit
def net_forward(prep, x_nchw):
    x = jnp.transpose(x_nchw, (0, 2, 3, 1)).astype(jnp.bfloat16)   # NCHW -> NHWC
    n, h, w, _ = x.shape

    # conv1 -> bn1 -> relu -> maxpool(2)   (single fused kernel)
    p1 = _im2col_pooled(x, 5, 2, prep["conv1_w"].shape[0])
    y1 = conv_bn_relu_pool(p1, prep["conv1_w"], prep["conv1_b"])   # (N*H/2*W/2, C1)
    y1 = y1.reshape(n, h // 2, w // 2, -1)

    # conv2 -> bn2 -> relu -> maxpool(2)   (single fused kernel)
    p2 = _im2col_pooled(y1, 3, 1, prep["conv2_w"].shape[0])
    y2 = conv_bn_relu_pool(p2, prep["conv2_w"], prep["conv2_b"])   # (N*H/4*W/4, C2)

    # dropout1 / dropout2: identity in inference mode.
    # Flatten in NHWC order (fc1 weight rows were permuted to match).
    feat = y2.reshape(n, -1)

    # fc1 -> relu -> fc2 -> log_softmax    (single fused kernel)
    return fc_head(feat, prep["fc1_w"], prep["fc1_b"],
                   prep["fc2_w"], prep["fc2_b"])


# ---------------------------------- main ------------------------------------

if __name__ == "__main__":
    key = jax.random.PRNGKey(0)
    k_params, k_x = jax.random.split(key)

    # Small shapes consistent with the module: batch=2, channels=3, spatial=16
    # (the real module uses 112x112; everything is parameterized off H, W).
    N, CIN, H, W = 2, 3, 16, 16
    params = init_params(k_params, cin=CIN, height=H, width=W)
    prep = prepare_params(params)
    x = jax.random.normal(k_x, (N, CIN, H, W), dtype=jnp.float32)   # NCHW input

    out = net_forward(prep, x)
    out = jax.block_until_ready(out)

    assert out.shape == (N, 10)
    # log_softmax rows should sum to 1 in probability space
    assert jnp.allclose(jnp.sum(jnp.exp(out), axis=1), 1.0, atol=1e-3)
    print("KERNEL_OK")
</pallas_src>

<mosaic_0001>
module attributes {stable_mosaic.version = 11 : i64} {
  func.func @conv_bn_relu_pool_kernel(%arg0: i32, %arg1: memref<4x128x80xbf16, #tpu.memory_space<vmem>>, %arg2: memref<80x24xbf16, #tpu.memory_space<vmem>>, %arg3: memref<1x24xf32, #tpu.memory_space<vmem>>, %arg4: memref<128x24xbf16, #tpu.memory_space<vmem>>) attributes {dimension_semantics = [#tpu.dimension_semantics<parallel>], iteration_bounds = array<i64: 1>, scalar_prefetch = 0 : i64, scratch_operands = 0 : i64, tpu.core_type = #tpu.core_type<tc>, window_params = [{transform_indices = @transform_0, window_bounds = array<i64: 4, 128, 80>}, {pipeline_mode = #tpu.pipeline_mode<synchronous>, transform_indices = @transform_1, window_bounds = array<i64: 80, 24>}, {pipeline_mode = #tpu.pipeline_mode<synchronous>, transform_indices = @transform_2, window_bounds = array<i64: 1, 24>}, {transform_indices = @transform_3, window_bounds = array<i64: 128, 24>}]} {
    %c0 = arith.constant 0 : index
    %c0_0 = arith.constant 0 : index
    %0 = vector.load %arg2[%c0, %c0_0] : memref<80x24xbf16, #tpu.memory_space<vmem>>, vector<80x24xbf16>
    %c0_1 = arith.constant 0 : index
    %c0_2 = arith.constant 0 : index
    %c0_3 = arith.constant 0 : index
    %1 = vector.load %arg1[%c0_1, %c0_2, %c0_3] : memref<4x128x80xbf16, #tpu.memory_space<vmem>>, vector<1x128x80xbf16>
    %2 = vector.shape_cast %1 : vector<1x128x80xbf16> to vector<128x80xbf16>
    %cst = arith.constant dense<0.000000e+00> : vector<128x24xf32>
    %3 = tpu.matmul %2, %0, %cst {dimension_numbers = #tpu.dot_dimension_numbers<[1], [0], [0], [1], [0, 0, 1, 1], [], []>} : vector<128x80xbf16>, vector<80x24xbf16>, vector<128x24xf32> -> vector<128x24xf32>
    %c1 = arith.constant 1 : index
    %c0_4 = arith.constant 0 : index
    %c0_5 = arith.constant 0 : index
    %4 = vector.load %arg1[%c1, %c0_4, %c0_5] : memref<4x128x80xbf16, #tpu.memory_space<vmem>>, vector<1x128x80xbf16>
    %5 = vector.shape_cast %4 : vector<1x128x80xbf16> to vector<128x80xbf16>
    %cst_6 = arith.constant dense<0.000000e+00> : vector<128x24xf32>
    %6 = tpu.matmul %5, %0, %cst_6 {dimension_numbers = #tpu.dot_dimension_numbers<[1], [0], [0], [1], [0, 0, 1, 1], [], []>} : vector<128x80xbf16>, vector<80x24xbf16>, vector<128x24xf32> -> vector<128x24xf32>
    %c2 = arith.constant 2 : index
    %c0_7 = arith.constant 0 : index
    %c0_8 = arith.constant 0 : index
    %7 = vector.load %arg1[%c2, %c0_7, %c0_8] : memref<4x128x80xbf16, #tpu.memory_space<vmem>>, vector<1x128x80xbf16>
    %8 = vector.shape_cast %7 : vector<1x128x80xbf16> to vector<128x80xbf16>
    %cst_9 = arith.constant dense<0.000000e+00> : vector<128x24xf32>
    %9 = tpu.matmul %8, %0, %cst_9 {dimension_numbers = #tpu.dot_dimension_numbers<[1], [0], [0], [1], [0, 0, 1, 1], [], []>} : vector<128x80xbf16>, vector<80x24xbf16>, vector<128x24xf32> -> vector<128x24xf32>
    %c3 = arith.constant 3 : index
    %c0_10 = arith.constant 0 : index
    %c0_11 = arith.constant 0 : index
    %10 = vector.load %arg1[%c3, %c0_10, %c0_11] : memref<4x128x80xbf16, #tpu.memory_space<vmem>>, vector<1x128x80xbf16>
    %11 = vector.shape_cast %10 : vector<1x128x80xbf16> to vector<128x80xbf16>
    %cst_12 = arith.constant dense<0.000000e+00> : vector<128x24xf32>
    %12 = tpu.matmul %11, %0, %cst_12 {dimension_numbers = #tpu.dot_dimension_numbers<[1], [0], [0], [1], [0, 0, 1, 1], [], []>} : vector<128x80xbf16>, vector<80x24xbf16>, vector<128x24xf32> -> vector<128x24xf32>
    %13 = arith.maximumf %3, %6 : vector<128x24xf32>
    %14 = arith.maximumf %9, %12 : vector<128x24xf32>
    %15 = arith.maximumf %13, %14 : vector<128x24xf32>
    %c0_13 = arith.constant 0 : index
    %c0_14 = arith.constant 0 : index
    %16 = vector.load %arg3[%c0_13, %c0_14] : memref<1x24xf32, #tpu.memory_space<vmem>>, vector<1x24xf32>
    %17 = vector.broadcast %16 : vector<1x24xf32> to vector<128x24xf32>
    %18 = arith.addf %15, %17 : vector<128x24xf32>
    %cst_15 = arith.constant 0.000000e+00 : f32
    %19 = vector.broadcast %cst_15 : f32 to vector<128x24xf32>
    %20 = arith.maximumf %18, %19 : vector<128x24xf32>
    %21 = arith.truncf %20 : vector<128x24xf32> to vector<128x24xbf16>
    %c0_16 = arith.constant 0 : index
    %c0_17 = arith.constant 0 : index
    %22 = vector.load %arg4[%c0_16, %c0_17] : memref<128x24xbf16, #tpu.memory_space<vmem>>, vector<128x24xbf16>
    tpu.vector_store %arg4[%c0_16, %c0_17], %21 {strides = array<i32>} : memref<128x24xbf16, #tpu.memory_space<vmem>>, vector<128x24xbf16>,
    return
  }
  func.func @transform_0(%arg0: i32) -> (i32, i32, i32) {
    %c0_i32 = arith.constant 0 : i32
    %c0_i32_0 = arith.constant 0 : i32
    %c0_i32_1 = arith.constant 0 : i32
    return %c0_i32, %arg0, %c0_i32_0 : i32, i32, i32
  }
  func.func @transform_1(%arg0: i32) -> (i32, i32) {
    %c0_i32 = arith.constant 0 : i32
    %c0_i32_0 = arith.constant 0 : i32
    %c0_i32_1 = arith.constant 0 : i32
    return %c0_i32, %c0_i32_0 : i32, i32
  }
  func.func @transform_2(%arg0: i32) -> (i32, i32) {
    %c0_i32 = arith.constant 0 : i32
    %c0_i32_0 = arith.constant 0 : i32
    %c0_i32_1 = arith.constant 0 : i32
    return %c0_i32, %c0_i32_0 : i32, i32
  }
  func.func @transform_3(%arg0: i32) -> (i32, i32) {
    %c0_i32 = arith.constant 0 : i32
    %c0_i32_0 = arith.constant 0 : i32
    return %arg0, %c0_i32 : i32, i32
  }
}

module attributes {stable_mosaic.version = 11 : i64} {
  func.func @conv_bn_relu_pool_kernel(%arg0: i32, %arg1: memref<4x32x216xbf16, #tpu.memory_space<vmem>>, %arg2: memref<216x48xbf16, #tpu.memory_space<vmem>>, %arg3: memref<1x48xf32, #tpu.memory_space<vmem>>, %arg4: memref<32x48xbf16, #tpu.memory_space<vmem>>) attributes {dimension_semantics = [#tpu.dimension_semantics<parallel>], iteration_bounds = array<i64: 1>, scalar_prefetch = 0 : i64, scratch_operands = 0 : i64, tpu.core_type = #tpu.core_type<tc>, window_params = [{transform_indices = @transform_0, window_bounds = array<i64: 4, 32, 216>}, {pipeline_mode = #tpu.pipeline_mode<synchronous>, transform_indices = @transform_1, window_bounds = array<i64: 216, 48>}, {pipeline_mode = #tpu.pipeline_mode<synchronous>, transform_indices = @transform_2, window_bounds = array<i64: 1, 48>}, {transform_indices = @transform_3, window_bounds = array<i64: 32, 48>}]} {
    %c0 = arith.constant 0 : index
    %c0_0 = arith.constant 0 : index
    %0 = vector.load %arg2[%c0, %c0_0] : memref<216x48xbf16, #tpu.memory_space<vmem>>, vector<216x48xbf16>
    %c0_1 = arith.constant 0 : index
    %c0_2 = arith.constant 0 : index
    %c0_3 = arith.constant 0 : index
    %1 = vector.load %arg1[%c0_1, %c0_2, %c0_3] : memref<4x32x216xbf16, #tpu.memory_space<vmem>>, vector<1x32x216xbf16>
    %2 = vector.shape_cast %1 : vector<1x32x216xbf16> to vector<32x216xbf16>
    %cst = arith.constant dense<0.000000e+00> : vector<32x48xf32>
    %3 = tpu.matmul %2, %0, %cst {dimension_numbers = #tpu.dot_dimension_numbers<[1], [0], [0], [1], [0, 0, 1, 1], [], []>} : vector<32x216xbf16>, vector<216x48xbf16>, vector<32x48xf32> -> vector<32x48xf32>
    %c1 = arith.constant 1 : index
    %c0_4 = arith.constant 0 : index
    %c0_5 = arith.constant 0 : index
    %4 = vector.load %arg1[%c1, %c0_4, %c0_5] : memref<4x32x216xbf16, #tpu.memory_space<vmem>>, vector<1x32x216xbf16>
    %5 = vector.shape_cast %4 : vector<1x32x216xbf16> to vector<32x216xbf16>
    %cst_6 = arith.constant dense<0.000000e+00> : vector<32x48xf32>
    %6 = tpu.matmul %5, %0, %cst_6 {dimension_numbers = #tpu.dot_dimension_numbers<[1], [0], [0], [1], [0, 0, 1, 1], [], []>} : vector<32x216xbf16>, vector<216x48xbf16>, vector<32x48xf32> -> vector<32x48xf32>
    %c2 = arith.constant 2 : index
    %c0_7 = arith.constant 0 : index
    %c0_8 = arith.constant 0 : index
    %7 = vector.load %arg1[%c2, %c0_7, %c0_8] : memref<4x32x216xbf16, #tpu.memory_space<vmem>>, vector<1x32x216xbf16>
    %8 = vector.shape_cast %7 : vector<1x32x216xbf16> to vector<32x216xbf16>
    %cst_9 = arith.constant dense<0.000000e+00> : vector<32x48xf32>
    %9 = tpu.matmul %8, %0, %cst_9 {dimension_numbers = #tpu.dot_dimension_numbers<[1], [0], [0], [1], [0, 0, 1, 1], [], []>} : vector<32x216xbf16>, vector<216x48xbf16>, vector<32x48xf32> -> vector<32x48xf32>
    %c3 = arith.constant 3 : index
    %c0_10 = arith.constant 0 : index
    %c0_11 = arith.constant 0 : index
    %10 = vector.load %arg1[%c3, %c0_10, %c0_11] : memref<4x32x216xbf16, #tpu.memory_space<vmem>>, vector<1x32x216xbf16>
    %11 = vector.shape_cast %10 : vector<1x32x216xbf16> to vector<32x216xbf16>
    %cst_12 = arith.constant dense<0.000000e+00> : vector<32x48xf32>
    %12 = tpu.matmul %11, %0, %cst_12 {dimension_numbers = #tpu.dot_dimension_numbers<[1], [0], [0], [1], [0, 0, 1, 1], [], []>} : vector<32x216xbf16>, vector<216x48xbf16>, vector<32x48xf32> -> vector<32x48xf32>
    %13 = arith.maximumf %3, %6 : vector<32x48xf32>
    %14 = arith.maximumf %9, %12 : vector<32x48xf32>
    %15 = arith.maximumf %13, %14 : vector<32x48xf32>
    %c0_13 = arith.constant 0 : index
    %c0_14 = arith.constant 0 : index
    %16 = vector.load %arg3[%c0_13, %c0_14] : memref<1x48xf32, #tpu.memory_space<vmem>>, vector<1x48xf32>
    %17 = vector.broadcast %16 : vector<1x48xf32> to vector<32x48xf32>
    %18 = arith.addf %15, %17 : vector<32x48xf32>
    %cst_15 = arith.constant 0.000000e+00 : f32
    %19 = vector.broadcast %cst_15 : f32 to vector<32x48xf32>
    %20 = arith.maximumf %18, %19 : vector<32x48xf32>
    %21 = arith.truncf %20 : vector<32x48xf32> to vector<32x48xbf16>
    %c0_16 = arith.constant 0 : index
    %c0_17 = arith.constant 0 : index
    %22 = vector.load %arg4[%c0_16, %c0_17] : memref<32x48xbf16, #tpu.memory_space<vmem>>, vector<32x48xbf16>
    tpu.vector_store %arg4[%c0_16, %c0_17], %21 {strides = array<i32>} : memref<32x48xbf16, #tpu.memory_space<vmem>>, vector<32x48xbf16>,
    return
  }
  func.func @transform_0(%arg0: i32) -> (i32, i32, i32) {
    %c0_i32 = arith.constant 0 : i32
    %c0_i32_0 = arith.constant 0 : i32
    %c0_i32_1 = arith.constant 0 : i32
    return %c0_i32, %arg0, %c0_i32_0 : i32, i32, i32
  }
  func.func @transform_1(%arg0: i32) -> (i32, i32) {
    %c0_i32 = arith.constant 0 : i32
    %c0_i32_0 = arith.constant 0 : i32
    %c0_i32_1 = arith.constant 0 : i32
    return %c0_i32, %c0_i32_0 : i32, i32
  }
  func.func @transform_2(%arg0: i32) -> (i32, i32) {
    %c0_i32 = arith.constant 0 : i32
    %c0_i32_0 = arith.constant 0 : i32
    %c0_i32_1 = arith.constant 0 : i32
    return %c0_i32, %c0_i32_0 : i32, i32
  }
  func.func @transform_3(%arg0: i32) -> (i32, i32) {
    %c0_i32 = arith.constant 0 : i32
    %c0_i32_0 = arith.constant 0 : i32
    return %arg0, %c0_i32 : i32, i32
  }
}

module attributes {stable_mosaic.version = 11 : i64} {
  func.func @fc_head_kernel(%arg0: i32, %arg1: memref<2x768xbf16, #tpu.memory_space<vmem>>, %arg2: memref<768x128xbf16, #tpu.memory_space<vmem>>, %arg3: memref<1x128xf32, #tpu.memory_space<vmem>>, %arg4: memref<128x10xf32, #tpu.memory_space<vmem>>, %arg5: memref<1x10xf32, #tpu.memory_space<vmem>>, %arg6: memref<2x10xf32, #tpu.memory_space<vmem>>) attributes {dimension_semantics = [#tpu.dimension_semantics<parallel>], iteration_bounds = array<i64: 1>, scalar_prefetch = 0 : i64, scratch_operands = 0 : i64, tpu.core_type = #tpu.core_type<tc>, window_params = [{transform_indices = @transform_0, window_bounds = array<i64: 2, 768>}, {pipeline_mode = #tpu.pipeline_mode<synchronous>, transform_indices = @transform_1, window_bounds = array<i64: 768, 128>}, {pipeline_mode = #tpu.pipeline_mode<synchronous>, transform_indices = @transform_2, window_bounds = array<i64: 1, 128>}, {pipeline_mode = #tpu.pipeline_mode<synchronous>, transform_indices = @transform_3, window_bounds = array<i64: 128, 10>}, {pipeline_mode = #tpu.pipeline_mode<synchronous>, transform_indices = @transform_4, window_bounds = array<i64: 1, 10>}, {transform_indices = @transform_5, window_bounds = array<i64: 2, 10>}]} {
    %c0 = arith.constant 0 : index
    %c0_0 = arith.constant 0 : index
    %0 = vector.load %arg1[%c0, %c0_0] : memref<2x768xbf16, #tpu.memory_space<vmem>>, vector<2x768xbf16>
    %c0_1 = arith.constant 0 : index
    %c0_2 = arith.constant 0 : index
    %1 = vector.load %arg2[%c0_1, %c0_2] : memref<768x128xbf16, #tpu.memory_space<vmem>>, vector<768x128xbf16>
    %cst = arith.constant dense<0.000000e+00> : vector<2x128xf32>
    %2 = tpu.matmul %0, %1, %cst {dimension_numbers = #tpu.dot_dimension_numbers<[1], [0], [0], [1], [0, 0, 1, 1], [], []>} : vector<2x768xbf16>, vector<768x128xbf16>, vector<2x128xf32> -> vector<2x128xf32>
    %c0_3 = arith.constant 0 : index
    %c0_4 = arith.constant 0 : index
    %3 = vector.load %arg3[%c0_3, %c0_4] : memref<1x128xf32, #tpu.memory_space<vmem>>, vector<1x128xf32>
    %4 = vector.broadcast %3 : vector<1x128xf32> to vector<2x128xf32>
    %5 = arith.addf %2, %4 : vector<2x128xf32>
    %cst_5 = arith.constant 0.000000e+00 : f32
    %6 = vector.broadcast %cst_5 : f32 to vector<2x128xf32>
    %7 = arith.maximumf %5, %6 : vector<2x128xf32>
    %c0_6 = arith.constant 0 : index
    %c0_7 = arith.constant 0 : index
    %8 = vector.load %arg4[%c0_6, %c0_7] : memref<128x10xf32, #tpu.memory_space<vmem>>, vector<128x10xf32>
    %cst_8 = arith.constant dense<0.000000e+00> : vector<2x10xf32>
    %9 = tpu.matmul %7, %8, %cst_8 {dimension_numbers = #tpu.dot_dimension_numbers<[1], [0], [0], [1], [0, 0, 1, 1], [], []>} : vector<2x128xf32>, vector<128x10xf32>, vector<2x10xf32> -> vector<2x10xf32>
    %c0_9 = arith.constant 0 : index
    %c0_10 = arith.constant 0 : index
    %10 = vector.load %arg5[%c0_9, %c0_10] : memref<1x10xf32, #tpu.memory_space<vmem>>, vector<1x10xf32>
    %11 = vector.broadcast %10 : vector<1x10xf32> to vector<2x10xf32>
    %12 = arith.addf %9, %11 : vector<2x10xf32>
    %cst_11 = arith.constant dense<0xFF800000> : vector<2xf32>
    %13 = vector.multi_reduction <maximumf>, %12, %cst_11 [1] : vector<2x10xf32> to vector<2xf32>
    %14 = vector.shape_cast %13 : vector<2xf32> to vector<2x1xf32>
    %15 = vector.broadcast %14 : vector<2x1xf32> to vector<2x10xf32>
    %16 = arith.subf %12, %15 : vector<2x10xf32>
    %17 = math.exp %16 : vector<2x10xf32>
    %cst_12 = arith.constant dense<0.000000e+00> : vector<2xf32>
    %18 = vector.multi_reduction <add>, %17, %cst_12 [1] : vector<2x10xf32> to vector<2xf32>
    %19 = vector.shape_cast %18 : vector<2xf32> to vector<2x1xf32>
    %20 = math.log %19 : vector<2x1xf32>
    %21 = arith.addf %20, %14 : vector<2x1xf32>
    %22 = vector.broadcast %21 : vector<2x1xf32> to vector<2x10xf32>
    %23 = arith.subf %12, %22 : vector<2x10xf32>
    %c0_13 = arith.constant 0 : index
    %c0_14 = arith.constant 0 : index
    %24 = vector.load %arg6[%c0_13, %c0_14] : memref<2x10xf32, #tpu.memory_space<vmem>>, vector<2x10xf32>
    tpu.vector_store %arg6[%c0_13, %c0_14], %23 {strides = array<i32>} : memref<2x10xf32, #tpu.memory_space<vmem>>, vector<2x10xf32>,
    return
  }
  func.func @transform_0(%arg0: i32) -> (i32, i32) {
    %c0_i32 = arith.constant 0 : i32
    %c0_i32_0 = arith.constant 0 : i32
    return %arg0, %c0_i32 : i32, i32
  }
  func.func @transform_1(%arg0: i32) -> (i32, i32) {
    %c0_i32 = arith.constant 0 : i32
    %c0_i32_0 = arith.constant 0 : i32
    %c0_i32_1 = arith.constant 0 : i32
    return %c0_i32, %c0_i32_0 : i32, i32
  }
  func.func @transform_2(%arg0: i32) -> (i32, i32) {
    %c0_i32 = arith.constant 0 : i32
    %c0_i32_0 = arith.constant 0 : i32
    %c0_i32_1 = arith.constant 0 : i32
    return %c0_i32, %c0_i32_0 : i32, i32
  }
  func.func @transform_3(%arg0: i32) -> (i32, i32) {
    %c0_i32 = arith.constant 0 : i32
    %c0_i32_0 = arith.constant 0 : i32
    %c0_i32_1 = arith.constant 0 : i32
    return %c0_i32, %c0_i32_0 : i32, i32
  }
  func.func @transform_4(%arg0: i32) -> (i32, i32) {
    %c0_i32 = arith.constant 0 : i32
    %c0_i32_0 = arith.constant 0 : i32
    %c0_i32_1 = arith.constant 0 : i32
    return %c0_i32, %c0_i32_0 : i32, i32
  }
  func.func @transform_5(%arg0: i32) -> (i32, i32) {
    %c0_i32 = arith.constant 0 : i32
    %c0_i32_0 = arith.constant 0 : i32
    return %arg0, %c0_i32 : i32, i32
  }
}

</mosaic_0001>

<llo_original>
// kernel: net_forward.3
$region0: #{net_forward.3}
  #allocation0 [shape = 'u32[]', space=smem, size = 0x4, offset = 0x4, fixed_abs, tag = 'smem constant byte address 0x4 - core index']
  #allocation1 [shape = 'u32[72,128]{1,0:T(1,128)}', space=vmem, size = 0x9000, scoped, tag = 'internal scratch']
  %s0 = inlined_call_operand.vmem [shape: bf16[4,128,80], index: 0, kind: input, shape index: {}]
  %s1 = inlined_call_operand.vmem [shape: bf16[80,24], index: 1, kind: input, shape index: {}]
  %s2 = inlined_call_operand.vmem [shape: f32[1,24], index: 2, kind: input, shape index: {}]
  %s3 = inlined_call_operand.vmem [shape: bf16[128,24], index: 3, kind: output, shape index: {}]
  %s4 = sld [smem:[#allocation0]]
  $region22: #{net_forward.3} parent=0
    _
  %s6 = ssub.s32 1, %s4
  %s7 = scalar_select 0, %s6, %s4
  // Predicated region
  $region2: #{net_forward.3} parent=0 // pred_check
    _
  $region3: #{net_forward.3} parent=0 // pred_check_branch
    %9 = sbr.rel (0) target = $region5
  $region4: #{net_forward.3} parent=0 // pred_region
    _
  $region5: #{net_forward.3} parent=0 // pred_fallthru
    _
  // Predicated region
  $region6: #{net_forward.3} parent=0 // pred_check
    _
  $region7: #{net_forward.3} parent=0 // pred_check_branch
    %11 = sbr.rel (0) target = $region9
  $region8: #{net_forward.3} parent=0 // pred_region
    _
  $region9: #{net_forward.3} parent=0 // pred_fallthru
    _
  // Predicated region
  $region10: #{net_forward.3} parent=0 // pred_check
    _
  $region11: #{net_forward.3} parent=0 // pred_check_branch
    %13 = sbr.rel (0) target = $region13
  $region12: #{net_forward.3} parent=0 // pred_region
    _
  $region13: #{net_forward.3} parent=0 // pred_fallthru
    _
  %v15 = vld [vmem:[%s1] sm:$0xf]
  %v16 = vld [vmem:[%s1 + $0x4] sm:$0xf]
  %v17 = vld [vmem:[%s1 + $0x8] sm:$0xf]
  %v18 = vld [vmem:[%s1 + $0xc] sm:$0xf]
  %v19 = vld [vmem:[%s1 + $0x10] sm:$0xf]
  %v20 = vld [vmem:[%s1 + $0x14] sm:$0xf]
  %v21 = vld [vmem:[%s1 + $0x18] sm:$0xf]
  %v22 = vld [vmem:[%s1 + $0x1c] sm:$0xf]
  %v23 = vld [vmem:[%s1 + $0x20] sm:$0xf]
  %v24 = vld [vmem:[%s1 + $0x24] sm:$0xf]
  %v25 = vld [vmem:[%s0] sm:$0xf]
  %v26 = vld [vmem:[%s0 + $0x4] sm:$0xf]
  %v27 = vld [vmem:[%s0 + $0x8] sm:$0xf]
  %v28 = vld [vmem:[%s0 + $0xc] sm:$0xf]
  %v29 = vld [vmem:[%s0 + $0x10] sm:$0xf]
  %v30 = vld [vmem:[%s0 + $0x14] sm:$0xf]
  %v31 = vld [vmem:[%s0 + $0x18] sm:$0xf]
  %v32 = vld [vmem:[%s0 + $0x1c] sm:$0xf]
  %v33 = vld [vmem:[%s0 + $0x20] sm:$0xf]
  %v34 = vld [vmem:[%s0 + $0x24] sm:$0xf]
  %v35 = vld [vmem:[%s0 + $0x28] sm:$0xf]
  %v36 = vld [vmem:[%s0 + $0x2c] sm:$0xf]
  %v37 = vld [vmem:[%s0 + $0x30] sm:$0xf]
  %v38 = vld [vmem:[%s0 + $0x34] sm:$0xf]
  %v39 = vld [vmem:[%s0 + $0x38] sm:$0xf]
  %v40 = vld [vmem:[%s0 + $0x3c] sm:$0xf]
  %v57 = vunpack.c.l.b16 %v25
  %v58 = vunpack.c.l.b16 %v26
  %v59 = vunpack.c.l.b16 %v27
  %v60 = vunpack.c.l.b16 %v28
  %v61 = vunpack.c.l.b16 %v29
  %v62 = vunpack.c.l.b16 %v30
  %v63 = vunpack.c.l.b16 %v31
  %v64 = vunpack.c.l.b16 %v32
  %v65 = vunpack.c.l.b16 %v33
  %v66 = vunpack.c.l.b16 %v34
  %v67 = vunpack.c.l.b16 %v35
  %v68 = vunpack.c.l.b16 %v36
  %v69 = vunpack.c.l.b16 %v37
  %v70 = vunpack.c.l.b16 %v38
  %v71 = vunpack.c.l.b16 %v39
  %v72 = vunpack.c.l.b16 %v40
  %v73 = vpack.c.b16 %v58, %v57
  %v74 = vpack.c.b16 %v60, %v59
  %v75 = vpack.c.b16 %v62, %v61
  %v76 = vpack.c.b16 %v64, %v63
  %v77 = vpack.c.b16 %v66, %v65
  %v78 = vpack.c.b16 %v68, %v67
  %v79 = vpack.c.b16 %v70, %v69
  %v80 = vpack.c.b16 %v72, %v71
  %v91 = vunpack.c.l.b16 %v15
  %v92 = vunpack.c.l.b16 %v16
  %v93 = vunpack.c.l.b16 %v17
  %v94 = vunpack.c.l.b16 %v18
  %v95 = vunpack.c.l.b16 %v19
  %v96 = vunpack.c.l.b16 %v20
  %v97 = vunpack.c.l.b16 %v21
  %v98 = vunpack.c.l.b16 %v22
  %v99 = vunpack.c.l.b16 %v23
  %v100 = vunpack.c.l.b16 %v24
  %v101 = vpack.c.b16 %v92, %v91
  %v102 = vpack.c.b16 %v94, %v93
  %v103 = vpack.c.b16 %v96, %v95
  %v104 = vpack.c.b16 %v98, %v97
  %v105 = vpack.c.b16 %v100, %v99
  %vm111 = vcmask 654336
  %v113 = vsel %vm111, %v73, 0
  %v116 = vsel %vm111, %v74, 0
  %v119 = vsel %vm111, %v75, 0
  %v122 = vsel %vm111, %v76, 0
  %v125 = vsel %vm111, %v77, 0
  %v128 = vsel %vm111, %v78, 0
  %v131 = vsel %vm111, %v79, 0
  %v134 = vsel %vm111, %v80, 0
  %136 = vmatpush.bf16.msra.mxu0 0
  %137 = vmatpush.bf16.msra.mxu0 0
  %138 = vmatpush.bf16.msra.mxu0 0
  %139 = vmatpush.bf16.msra.mxu0 %v105
  %140 = vmatpush.bf16.msra.mxu0 %v104
  %141 = vmatpush.bf16.msra.mxu0 %v103
  %142 = vmatpush.bf16.msra.mxu0 %v102
  %143 = vmatpush.bf16.msra.mxu0 %v101
  %144 = vmatmul.bf16.gmra.mxu0 %v113
  %v145 = vpop.f32.mrf.mxu0
  %v146 = vadd.f32 0.0, %v145
  %v147 = vpop.f32.mrf.mxu0
  %v148 = vadd.f32 0.0, %v147
  %149 = vmatmul.bf16.gmra.mxu0 %v116
  %v150 = vpop.f32.mrf.mxu0
  %v151 = vadd.f32 0.0, %v150
  %v152 = vpop.f32.mrf.mxu0
  %v153 = vadd.f32 0.0, %v152
  %154 = vmatmul.bf16.gmra.mxu0 %v119
  %v155 = vpop.f32.mrf.mxu0
  %v156 = vadd.f32 0.0, %v155
  %v157 = vpop.f32.mrf.mxu0
  %v158 = vadd.f32 0.0, %v157
  %159 = vmatmul.bf16.gmra.mxu0 %v122
  %v160 = vpop.f32.mrf.mxu0
  %v161 = vadd.f32 0.0, %v160
  %v162 = vpop.f32.mrf.mxu0
  %v163 = vadd.f32 0.0, %v162
  %164 = vmatmul.bf16.gmra.mxu0 %v125
  %v165 = vpop.f32.mrf.mxu0
  %v166 = vadd.f32 0.0, %v165
  %v167 = vpop.f32.mrf.mxu0
  %v168 = vadd.f32 0.0, %v167
  %169 = vmatmul.bf16.gmra.mxu0 %v128
  %v170 = vpop.f32.mrf.mxu0
  %v171 = vadd.f32 0.0, %v170
  %v172 = vpop.f32.mrf.mxu0
  %v173 = vadd.f32 0.0, %v172
  %174 = vmatmul.bf16.gmra.mxu0 %v131
  %v175 = vpop.f32.mrf.mxu0
  %v176 = vadd.f32 0.0, %v175
  %v177 = vpop.f32.mrf.mxu0
  %v178 = vadd.f32 0.0, %v177
  %179 = vmatmul.bf16.gmra.mxu0 %v134
  %v180 = vpop.f32.mrf.mxu0
  %v181 = vadd.f32 0.0, %v180
  %v182 = vpop.f32.mrf.mxu0
  %v183 = vadd.f32 0.0, %v182
  %184 = vdwg.mxu0
  %s185 = scalar_lea.vmem %s0, 64
  %v186 = vld [vmem:[%s185] sm:$0xf]
  %v187 = vld [vmem:[%s185 + $0x4] sm:$0xf]
  %v188 = vld [vmem:[%s185 + $0x8] sm:$0xf]
  %v189 = vld [vmem:[%s185 + $0xc] sm:$0xf]
  %v190 = vld [vmem:[%s185 + $0x10] sm:$0xf]
  %v191 = vld [vmem:[%s185 + $0x14] sm:$0xf]
  %v192 = vld [vmem:[%s185 + $0x18] sm:$0xf]
  %v193 = vld [vmem:[%s185 + $0x1c] sm:$0xf]
  %v194 = vld [vmem:[%s185 + $0x20] sm:$0xf]
  %v195 = vld [vmem:[%s185 + $0x24] sm:$0xf]
  %v196 = vld [vmem:[%s185 + $0x28] sm:$0xf]
  %v197 = vld [vmem:[%s185 + $0x2c] sm:$0xf]
  %v198 = vld [vmem:[%s185 + $0x30] sm:$0xf]
  %v199 = vld [vmem:[%s185 + $0x34] sm:$0xf]
  %v200 = vld [vmem:[%s185 + $0x38] sm:$0xf]
  %v201 = vld [vmem:[%s185 + $0x3c] sm:$0xf]
  %v218 = vunpack.c.l.b16 %v186
  %v219 = vunpack.c.l.b16 %v187
  %v220 = vunpack.c.l.b16 %v188
  %v221 = vunpack.c.l.b16 %v189
  %v222 = vunpack.c.l.b16 %v190
  %v223 = vunpack.c.l.b16 %v191
  %v224 = vunpack.c.l.b16 %v192
  %v225 = vunpack.c.l.b16 %v193
  %v226 = vunpack.c.l.b16 %v194
  %v227 = vunpack.c.l.b16 %v195
  %v228 = vunpack.c.l.b16 %v196
  %v229 = vunpack.c.l.b16 %v197
  %v230 = vunpack.c.l.b16 %v198
  %v231 = vunpack.c.l.b16 %v199
  %v232 = vunpack.c.l.b16 %v200
  %v233 = vunpack.c.l.b16 %v201
  %v234 = vpack.c.b16 %v219, %v218
  %v235 = vpack.c.b16 %v221, %v220
  %v236 = vpack.c.b16 %v223, %v222
  %v237 = vpack.c.b16 %v225, %v224
  %v238 = vpack.c.b16 %v227, %v226
  %v239 = vpack.c.b16 %v229, %v228
  %v240 = vpack.c.b16 %v231, %v230
  %v241 = vpack.c.b16 %v233, %v232
  %v243 = vsel %vm111, %v234, 0
  %v246 = vsel %vm111, %v235, 0
  %v249 = vsel %vm111, %v236, 0
  %v252 = vsel %vm111, %v237, 0
  %v255 = vsel %vm111, %v238, 0
  %v258 = vsel %vm111, %v239, 0
  %v261 = vsel %vm111, %v240, 0
  %v264 = vsel %vm111, %v241, 0
  %266 = vmatpush.bf16.msra.mxu0 0
  %267 = vmatpush.bf16.msra.mxu0 0
  %268 = vmatpush.bf16.msra.mxu0 0
  %269 = vmatpush.bf16.msra.mxu0 %v105
  %270 = vmatpush.bf16.msra.mxu0 %v104
  %271 = vmatpush.bf16.msra.mxu0 %v103
  %272 = vmatpush.bf16.msra.mxu0 %v102
  %273 = vmatpush.bf16.msra.mxu0 %v101
  %274 = vmatmul.bf16.gmra.mxu0 %v243
  %v275 = vpop.f32.mrf.mxu0
  %v276 = vadd.f32 0.0, %v275
  %v277 = vpop.f32.mrf.mxu0
  %v278 = vadd.f32 0.0, %v277
  %279 = vmatmul.bf16.gmra.mxu0 %v246
  %v280 = vpop.f32.mrf.mxu0
  %v281 = vadd.f32 0.0, %v280
  %v282 = vpop.f32.mrf.mxu0
  %v283 = vadd.f32 0.0, %v282
  %284 = vmatmul.bf16.gmra.mxu0 %v249
  %v285 = vpop.f32.mrf.mxu0
  %v286 = vadd.f32 0.0, %v285
  %v287 = vpop.f32.mrf.mxu0
  %v288 = vadd.f32 0.0, %v287
  %289 = vmatmul.bf16.gmra.mxu0 %v252
  %v290 = vpop.f32.mrf.mxu0
  %v291 = vadd.f32 0.0, %v290
  %v292 = vpop.f32.mrf.mxu0
  %v293 = vadd.f32 0.0, %v292
  %294 = vmatmul.bf16.gmra.mxu0 %v255
  %v295 = vpop.f32.mrf.mxu0
  %v296 = vadd.f32 0.0, %v295
  %v297 = vpop.f32.mrf.mxu0
  %v298 = vadd.f32 0.0, %v297
  %299 = vmatmul.bf16.gmra.mxu0 %v258
  %v300 = vpop.f32.mrf.mxu0
  %v301 = vadd.f32 0.0, %v300
  %v302 = vpop.f32.mrf.mxu0
  %v303 = vadd.f32 0.0, %v302
  %304 = vmatmul.bf16.gmra.mxu0 %v261
  %v305 = vpop.f32.mrf.mxu0
  %v306 = vadd.f32 0.0, %v305
  %v307 = vpop.f32.mrf.mxu0
  %v308 = vadd.f32 0.0, %v307
  %309 = vmatmul.bf16.gmra.mxu0 %v264
  %v310 = vpop.f32.mrf.mxu0
  %v311 = vadd.f32 0.0, %v310
  %v312 = vpop.f32.mrf.mxu0
  %v313 = vadd.f32 0.0, %v312
  %314 = vdwg.mxu0
  %s315 = scalar_lea.vmem %s0, 128
  %v316 = vld [vmem:[%s315] sm:$0xf]
  %v317 = vld [vmem:[%s315 + $0x4] sm:$0xf]
  %v318 = vld [vmem:[%s315 + $0x8] sm:$0xf]
  %v319 = vld [vmem:[%s315 + $0xc] sm:$0xf]
  %v320 = vld [vmem:[%s315 + $0x10] sm:$0xf]
  %v321 = vld [vmem:[%s315 + $0x14] sm:$0xf]
  %v322 = vld [vmem:[%s315 + $0x18] sm:$0xf]
  %v323 = vld [vmem:[%s315 + $0x1c] sm:$0xf]
  %v324 = vld [vmem:[%s315 + $0x20] sm:$0xf]
  %v325 = vld [vmem:[%s315 + $0x24] sm:$0xf]
  %v326 = vld [vmem:[%s315 + $0x28] sm:$0xf]
  %v327 = vld [vmem:[%s315 + $0x2c] sm:$0xf]
  %v328 = vld [vmem:[%s315 + $0x30] sm:$0xf]
  %v329 = vld [vmem:[%s315 + $0x34] sm:$0xf]
  %v330 = vld [vmem:[%s315 + $0x38] sm:$0xf]
  %v331 = vld [vmem:[%s315 + $0x3c] sm:$0xf]
  %v348 = vunpack.c.l.b16 %v316
  %v349 = vunpack.c.l.b16 %v317
  %v350 = vunpack.c.l.b16 %v318
  %v351 = vunpack.c.l.b16 %v319
  %v352 = vunpack.c.l.b16 %v320
  %v353 = vunpack.c.l.b16 %v321
  %v354 = vunpack.c.l.b16 %v322
  %v355 = vunpack.c.l.b16 %v323
  %v356 = vunpack.c.l.b16 %v324
  %v357 = vunpack.c.l.b16 %v325
  %v358 = vunpack.c.l.b16 %v326
  %v359 = vunpack.c.l.b16 %v327
  %v360 = vunpack.c.l.b16 %v328
  %v361 = vunpack.c.l.b16 %v329
  %v362 = vunpack.c.l.b16 %v330
  %v363 = vunpack.c.l.b16 %v331
  %v364 = vpack.c.b16 %v349, %v348
  %v365 = vpack.c.b16 %v351, %v350
  %v366 = vpack.c.b16 %v353, %v352
  %v367 = vpack.c.b16 %v355, %v354
  %v368 = vpack.c.b16 %v357, %v356
  %v369 = vpack.c.b16 %v359, %v358
  %v370 = vpack.c.b16 %v361, %v360
  %v371 = vpack.c.b16 %v363, %v362
  %v373 = vsel %vm111, %v364, 0
  %v376 = vsel %vm111, %v365, 0
  %v379 = vsel %vm111, %v366, 0
  %v382 = vsel %vm111, %v367, 0
  %v385 = vsel %vm111, %v368, 0
  %v388 = vsel %vm111, %v369, 0
  %v391 = vsel %vm111, %v370, 0
  %v394 = vsel %vm111, %v371, 0
  %396 = vmatpush.bf16.msra.mxu0 0
  %397 = vmatpush.bf16.msra.mxu0 0
  %398 = vmatpush.bf16.msra.mxu0 0
  %399 = vmatpush.bf16.msra.mxu0 %v105
  %400 = vmatpush.bf16.msra.mxu0 %v104
  %401 = vmatpush.bf16.msra.mxu0 %v103
  %402 = vmatpush.bf16.msra.mxu0 %v102
  %403 = vmatpush.bf16.msra.mxu0 %v101
  %404 = vmatmul.bf16.gmra.mxu0 %v373
  %v405 = vpop.f32.mrf.mxu0
  %v406 = vadd.f32 0.0, %v405
  %v407 = vpop.f32.mrf.mxu0
  %v408 = vadd.f32 0.0, %v407
  %409 = vmatmul.bf16.gmra.mxu0 %v376
  %v410 = vpop.f32.mrf.mxu0
  %v411 = vadd.f32 0.0, %v410
  %v412 = vpop.f32.mrf.mxu0
  %v413 = vadd.f32 0.0, %v412
  %414 = vmatmul.bf16.gmra.mxu0 %v379
  %v415 = vpop.f32.mrf.mxu0
  %v416 = vadd.f32 0.0, %v415
  %v417 = vpop.f32.mrf.mxu0
  %v418 = vadd.f32 0.0, %v417
  %419 = vmatmul.bf16.gmra.mxu0 %v382
  %v420 = vpop.f32.mrf.mxu0
  %v421 = vadd.f32 0.0, %v420
  %v422 = vpop.f32.mrf.mxu0
  %v423 = vadd.f32 0.0, %v422
  %424 = vmatmul.bf16.gmra.mxu0 %v385
  %v425 = vpop.f32.mrf.mxu0
  %v426 = vadd.f32 0.0, %v425
  %v427 = vpop.f32.mrf.mxu0
  %v428 = vadd.f32 0.0, %v427
  %429 = vmatmul.bf16.gmra.mxu0 %v388
  %v430 = vpop.f32.mrf.mxu0
  %v431 = vadd.f32 0.0, %v430
  %v432 = vpop.f32.mrf.mxu0
  %v433 = vadd.f32 0.0, %v432
  %434 = vmatmul.bf16.gmra.mxu0 %v391
  %v435 = vpop.f32.mrf.mxu0
  %v436 = vadd.f32 0.0, %v435
  %v437 = vpop.f32.mrf.mxu0
  %v438 = vadd.f32 0.0, %v437
  %439 = vmatmul.bf16.gmra.mxu0 %v394
  %v440 = vpop.f32.mrf.mxu0
  %v441 = vadd.f32 0.0, %v440
  %v442 = vpop.f32.mrf.mxu0
  %v443 = vadd.f32 0.0, %v442
  %444 = vdwg.mxu0
  %s445 = scalar_lea.vmem %s0, 192
  %v446 = vld [vmem:[%s445] sm:$0xf]
  %v447 = vld [vmem:[%s445 + $0x4] sm:$0xf]
  %v448 = vld [vmem:[%s445 + $0x8] sm:$0xf]
  %v449 = vld [vmem:[%s445 + $0xc] sm:$0xf]
  %v450 = vld [vmem:[%s445 + $0x10] sm:$0xf]
  %v451 = vld [vmem:[%s445 + $0x14] sm:$0xf]
  %v452 = vld [vmem:[%s445 + $0x18] sm:$0xf]
  %v453 = vld [vmem:[%s445 + $0x1c] sm:$0xf]
  %v454 = vld [vmem:[%s445 + $0x20] sm:$0xf]
  %v455 = vld [vmem:[%s445 + $0x24] sm:$0xf]
  %v456 = vld [vmem:[%s445 + $0x28] sm:$0xf]
  %v457 = vld [vmem:[%s445 + $0x2c] sm:$0xf]
  %v458 = vld [vmem:[%s445 + $0x30] sm:$0xf]
  %v459 = vld [vmem:[%s445 + $0x34] sm:$0xf]
  %v460 = vld [vmem:[%s445 + $0x38] sm:$0xf]
  %v461 = vld [vmem:[%s445 + $0x3c] sm:$0xf]
  %v478 = vunpack.c.l.b16 %v446
  %v479 = vunpack.c.l.b16 %v447
  %v480 = vunpack.c.l.b16 %v448
  %v481 = vunpack.c.l.b16 %v449
  %v482 = vunpack.c.l.b16 %v450
  %v483 = vunpack.c.l.b16 %v451
  %v484 = vunpack.c.l.b16 %v452
  %v485 = vunpack.c.l.b16 %v453
  %v486 = vunpack.c.l.b16 %v454
  %v487 = vunpack.c.l.b16 %v455
  %v488 = vunpack.c.l.b16 %v456
  %v489 = vunpack.c.l.b16 %v457
  %v490 = vunpack.c.l.b16 %v458
  %v491 = vunpack.c.l.b16 %v459
  %v492 = vunpack.c.l.b16 %v460
  %v493 = vunpack.c.l.b16 %v461
  %v494 = vpack.c.b16 %v479, %v478
  %v495 = vpack.c.b16 %v481, %v480
  %v496 = vpack.c.b16 %v483, %v482
  %v497 = vpack.c.b16 %v485, %v484
  %v498 = vpack.c.b16 %v487, %v486
  %v499 = vpack.c.b16 %v489, %v488
  %v500 = vpack.c.b16 %v491, %v490
  %v501 = vpack.c.b16 %v493, %v492
  %v503 = vsel %vm111, %v494, 0
  %v506 = vsel %vm111, %v495, 0
  %v509 = vsel %vm111, %v496, 0
  %v512 = vsel %vm111, %v497, 0
  %v515 = vsel %vm111, %v498, 0
  %v518 = vsel %vm111, %v499, 0
  %v521 = vsel %vm111, %v500, 0
  %v524 = vsel %vm111, %v501, 0
  %526 = vmatpush.bf16.msra.mxu0 0
  %527 = vmatpush.bf16.msra.mxu0 0
  %528 = vmatpush.bf16.msra.mxu0 0
  %529 = vmatpush.bf16.msra.mxu0 %v105
  %530 = vmatpush.bf16.msra.mxu0 %v104
  %531 = vmatpush.bf16.msra.mxu0 %v103
  %532 = vmatpush.bf16.msra.mxu0 %v102
  %533 = vmatpush.bf16.msra.mxu0 %v101
  %534 = vmatmul.bf16.gmra.mxu0 %v503
  %v535 = vpop.f32.mrf.mxu0
  %v536 = vadd.f32 0.0, %v535
  %v537 = vpop.f32.mrf.mxu0
  %v538 = vadd.f32 0.0, %v537
  %539 = vmatmul.bf16.gmra.mxu0 %v506
  %v540 = vpop.f32.mrf.mxu0
  %v541 = vadd.f32 0.0, %v540
  %v542 = vpop.f32.mrf.mxu0
  %v543 = vadd.f32 0.0, %v542
  %544 = vmatmul.bf16.gmra.mxu0 %v509
  %v545 = vpop.f32.mrf.mxu0
  %v546 = vadd.f32 0.0, %v545
  %v547 = vpop.f32.mrf.mxu0
  %v548 = vadd.f32 0.0, %v547
  %549 = vmatmul.bf16.gmra.mxu0 %v512
  %v550 = vpop.f32.mrf.mxu0
  %v551 = vadd.f32 0.0, %v550
  %v552 = vpop.f32.mrf.mxu0
  %v553 = vadd.f32 0.0, %v552
  %554 = vmatmul.bf16.gmra.mxu0 %v515
  %v555 = vpop.f32.mrf.mxu0
  %v556 = vadd.f32 0.0, %v555
  %v557 = vpop.f32.mrf.mxu0
  %v558 = vadd.f32 0.0, %v557
  %559 = vmatmul.bf16.gmra.mxu0 %v518
  %v560 = vpop.f32.mrf.mxu0
  %v561 = vadd.f32 0.0, %v560
  %v562 = vpop.f32.mrf.mxu0
  %v563 = vadd.f32 0.0, %v562
  %564 = vmatmul.bf16.gmra.mxu0 %v521
  %v565 = vpop.f32.mrf.mxu0
  %v566 = vadd.f32 0.0, %v565
  %v567 = vpop.f32.mrf.mxu0
  %v568 = vadd.f32 0.0, %v567
  %569 = vmatmul.bf16.gmra.mxu0 %v524
  %v570 = vpop.f32.mrf.mxu0
  %v571 = vadd.f32 0.0, %v570
  %v572 = vpop.f32.mrf.mxu0
  %v573 = vadd.f32 0.0, %v572
  %574 = vdwg.mxu0
  %v575 = vmax.f32 %v146, %v276
  %v576 = vmax.f32 %v148, %v278
  %v577 = vmax.f32 %v151, %v281
  %v578 = vmax.f32 %v153, %v283
  %v579 = vmax.f32 %v156, %v286
  %v580 = vmax.f32 %v158, %v288
  %v581 = vmax.f32 %v161, %v291
  %v582 = vmax.f32 %v163, %v293
  %v583 = vmax.f32 %v166, %v296
  %v584 = vmax.f32 %v168, %v298
  %v585 = vmax.f32 %v171, %v301
  %v586 = vmax.f32 %v173, %v303
  %v587 = vmax.f32 %v176, %v306
  %v588 = vmax.f32 %v178, %v308
  %v589 = vmax.f32 %v181, %v311
  %v590 = vmax.f32 %v183, %v313
  %v591 = vmax.f32 %v406, %v536
  %v592 = vmax.f32 %v408, %v538
  %v593 = vmax.f32 %v411, %v541
  %v594 = vmax.f32 %v413, %v543
  %v595 = vmax.f32 %v416, %v546
  %v596 = vmax.f32 %v418, %v548
  %v597 = vmax.f32 %v421, %v551
  %v598 = vmax.f32 %v423, %v553
  %v599 = vmax.f32 %v426, %v556
  %v600 = vmax.f32 %v428, %v558
  %v601 = vmax.f32 %v431, %v561
  %v602 = vmax.f32 %v433, %v563
  %v603 = vmax.f32 %v436, %v566
  %v604 = vmax.f32 %v438, %v568
  %v605 = vmax.f32 %v441, %v571
  %v606 = vmax.f32 %v443, %v573
  %v607 = vmax.f32 %v575, %v591
  %v608 = vmax.f32 %v576, %v592
  %v609 = vmax.f32 %v577, %v593
  %v610 = vmax.f32 %v578, %v594
  %v611 = vmax.f32 %v579, %v595
  %v612 = vmax.f32 %v580, %v596
  %v613 = vmax.f32 %v581, %v597
  %v614 = vmax.f32 %v582, %v598
  %v615 = vmax.f32 %v583, %v599
  %v616 = vmax.f32 %v584, %v600
  %v617 = vmax.f32 %v585, %v601
  %v618 = vmax.f32 %v586, %v602
  %v619 = vmax.f32 %v587, %v603
  %v620 = vmax.f32 %v588, %v604
  %v621 = vmax.f32 %v589, %v605
  %v622 = vmax.f32 %v590, %v606
  %v623 = vld [vmem:[%s2] sm:$0x1]
  %v625 = vperm.slane %v623, 0
  %v627 = vadd.f32 %v607, %v625
  %v628 = vadd.f32 %v608, %v625
  %v629 = vadd.f32 %v609, %v625
  %v630 = vadd.f32 %v610, %v625
  %v631 = vadd.f32 %v611, %v625
  %v632 = vadd.f32 %v612, %v625
  %v633 = vadd.f32 %v613, %v625
  %v634 = vadd.f32 %v614, %v625
  %v635 = vadd.f32 %v615, %v625
  %v636 = vadd.f32 %v616, %v625
  %v637 = vadd.f32 %v617, %v625
  %v638 = vadd.f32 %v618, %v625
  %v639 = vadd.f32 %v619, %v625
  %v640 = vadd.f32 %v620, %v625
  %v641 = vadd.f32 %v621, %v625
  %v642 = vadd.f32 %v622, %v625
  %v643 = vmax.f32 %v627, 0.0
  %v644 = vmax.f32 %v628, 0.0
  %v645 = vmax.f32 %v629, 0.0
  %v646 = vmax.f32 %v630, 0.0
  %v647 = vmax.f32 %v631, 0.0
  %v648 = vmax.f32 %v632, 0.0
  %v649 = vmax.f32 %v633, 0.0
  %v650 = vmax.f32 %v634, 0.0
  %v651 = vmax.f32 %v635, 0.0
  %v652 = vmax.f32 %v636, 0.0
  %v653 = vmax.f32 %v637, 0.0
  %v654 = vmax.f32 %v638, 0.0
  %v655 = vmax.f32 %v639, 0.0
  %v656 = vmax.f32 %v640, 0.0
  %v657 = vmax.f32 %v641, 0.0
  %v658 = vmax.f32 %v642, 0.0
  %v659 = vpack.c.bf16 %v643, %v643
  %v660 = vpack.c.bf16 %v644, %v644
  %v661 = vpack.c.bf16 %v645, %v645
  %v662 = vpack.c.bf16 %v646, %v646
  %v663 = vpack.c.bf16 %v647, %v647
  %v664 = vpack.c.bf16 %v648, %v648
  %v665 = vpack.c.bf16 %v649, %v649
  %v666 = vpack.c.bf16 %v650, %v650
  %v667 = vpack.c.bf16 %v651, %v651
  %v668 = vpack.c.bf16 %v652, %v652
  %v669 = vpack.c.bf16 %v653, %v653
  %v670 = vpack.c.bf16 %v654, %v654
  %v671 = vpack.c.bf16 %v655, %v655
  %v672 = vpack.c.bf16 %v656, %v656
  %v673 = vpack.c.bf16 %v657, %v657
  %v674 = vpack.c.bf16 %v658, %v658
  %vm675 = vcmask 191488
  %676 = vst.msk [vmem:[%s3] sm:$0xf] %vm675, %v659
  %677 = vst.msk [vmem:[%s3 + $0x4] sm:$0xf] %vm675, %v660
  %678 = vst.msk [vmem:[%s3 + $0x8] sm:$0xf] %vm675, %v661
  %679 = vst.msk [vmem:[%s3 + $0xc] sm:$0xf] %vm675, %v662
  %680 = vst.msk [vmem:[%s3 + $0x10] sm:$0xf] %vm675, %v663
  %681 = vst.msk [vmem:[%s3 + $0x14] sm:$0xf] %vm675, %v664
  %682 = vst.msk [vmem:[%s3 + $0x18] sm:$0xf] %vm675, %v665
  %683 = vst.msk [vmem:[%s3 + $0x1c] sm:$0xf] %vm675, %v666
  %684 = vst.msk [vmem:[%s3 + $0x20] sm:$0xf] %vm675, %v667
  %685 = vst.msk [vmem:[%s3 + $0x24] sm:$0xf] %vm675, %v668
  %686 = vst.msk [vmem:[%s3 + $0x28] sm:$0xf] %vm675, %v669
  %687 = vst.msk [vmem:[%s3 + $0x2c] sm:$0xf] %vm675, %v670
  %688 = vst.msk [vmem:[%s3 + $0x30] sm:$0xf] %vm675, %v671
  %689 = vst.msk [vmem:[%s3 + $0x34] sm:$0xf] %vm675, %v672
  %690 = vst.msk [vmem:[%s3 + $0x38] sm:$0xf] %vm675, %v673
  %691 = vst.msk [vmem:[%s3 + $0x3c] sm:$0xf] %vm675, %v674
  // Predicated region
  $region14: #{net_forward.3} parent=0 // pred_check
    _
  $region15: #{net_forward.3} parent=0 // pred_check_branch
    %693 = sbr.rel (0) target = $region17
  $region16: #{net_forward.3} parent=0 // pred_region
    _
  $region17: #{net_forward.3} parent=0 // pred_fallthru
    _
  // Predicated region
  $region18: #{net_forward.3} parent=0 // pred_check
    _
  $region19: #{net_forward.3} parent=0 // pred_check_branch
    %695 = sbr.rel (0) target = $region21
  $region20: #{net_forward.3} parent=0 // pred_region
    _
  $region21: #{net_forward.3} parent=0 // pred_fallthru
    _

// kernel: net_forward.4
$region0: #{net_forward.4}
  #allocation0 [shape = 'u32[]', space=smem, size = 0x4, offset = 0x4, fixed_abs, tag = 'smem constant byte address 0x4 - core index']
  #allocation1 [shape = 'u32[72,128]{1,0:T(1,128)}', space=vmem, size = 0x9000, scoped, tag = 'internal scratch']
  %s0 = inlined_call_operand.vmem [shape: bf16[4,32,216], index: 0, kind: input, shape index: {}]
  %s1 = inlined_call_operand.vmem [shape: bf16[216,48], index: 1, kind: input, shape index: {}]
  %s2 = inlined_call_operand.vmem [shape: f32[1,48], index: 2, kind: input, shape index: {}]
  %s3 = inlined_call_operand.vmem [shape: bf16[32,48], index: 3, kind: output, shape index: {}]
  %s4 = sld [smem:[#allocation0]]
  $region22: #{net_forward.4} parent=0
    _
  %s6 = ssub.s32 1, %s4
  %s7 = scalar_select 0, %s6, %s4
  // Predicated region
  $region2: #{net_forward.4} parent=0 // pred_check
    _
  $region3: #{net_forward.4} parent=0 // pred_check_branch
    %9 = sbr.rel (0) target = $region5
  $region4: #{net_forward.4} parent=0 // pred_region
    _
  $region5: #{net_forward.4} parent=0 // pred_fallthru
    _
  // Predicated region
  $region6: #{net_forward.4} parent=0 // pred_check
    _
  $region7: #{net_forward.4} parent=0 // pred_check_branch
    %11 = sbr.rel (0) target = $region9
  $region8: #{net_forward.4} parent=0 // pred_region
    _
  $region9: #{net_forward.4} parent=0 // pred_fallthru
    _
  // Predicated region
  $region10: #{net_forward.4} parent=0 // pred_check
    _
  $region11: #{net_forward.4} parent=0 // pred_check_branch
    %13 = sbr.rel (0) target = $region13
  $region12: #{net_forward.4} parent=0 // pred_region
    _
  $region13: #{net_forward.4} parent=0 // pred_fallthru
    _
  %v15 = vld [vmem:[%s1] sm:$0xf]
  %v16 = vld [vmem:[%s1 + $0x4] sm:$0xf]
  %v17 = vld [vmem:[%s1 + $0x8] sm:$0xf]
  %v18 = vld [vmem:[%s1 + $0xc] sm:$0xf]
  %v19 = vld [vmem:[%s1 + $0x10] sm:$0xf]
  %v20 = vld [vmem:[%s1 + $0x14] sm:$0xf]
  %v21 = vld [vmem:[%s1 + $0x18] sm:$0xf]
  %v22 = vld [vmem:[%s1 + $0x1c] sm:$0xf]
  %v23 = vld [vmem:[%s1 + $0x20] sm:$0xf]
  %v24 = vld [vmem:[%s1 + $0x24] sm:$0xf]
  %v25 = vld [vmem:[%s1 + $0x28] sm:$0xf]
  %v26 = vld [vmem:[%s1 + $0x2c] sm:$0xf]
  %v27 = vld [vmem:[%s1 + $0x30] sm:$0xf]
  %v28 = vld [vmem:[%s1 + $0x34] sm:$0xf]
  %v29 = vld [vmem:[%s1 + $0x38] sm:$0xf]
  %v30 = vld [vmem:[%s1 + $0x3c] sm:$0xf]
  %v31 = vld [vmem:[%s1 + $0x40] sm:$0xf]
  %v32 = vld [vmem:[%s1 + $0x44] sm:$0xf]
  %v33 = vld [vmem:[%s1 + $0x48] sm:$0xf]
  %v34 = vld [vmem:[%s1 + $0x4c] sm:$0xf]
  %v35 = vld [vmem:[%s1 + $0x50] sm:$0xf]
  %v36 = vld [vmem:[%s1 + $0x54] sm:$0xf]
  %v37 = vld [vmem:[%s1 + $0x58] sm:$0xf]
  %v38 = vld [vmem:[%s1 + $0x5c] sm:$0xf]
  %v39 = vld [vmem:[%s1 + $0x60] sm:$0xf]
  %v40 = vld [vmem:[%s1 + $0x64] sm:$0xf]
  %v41 = vld [vmem:[%s1 + $0x68] sm:$0xf]
  %v42 = vld [vmem:[%s0] sm:$0xff]
  %v43 = vld [vmem:[%s0 + $0x8] sm:$0xff]
  %v44 = vld [vmem:[%s0 + $0x10] sm:$0xff]
  %v45 = vld [vmem:[%s0 + $0x18] sm:$0xff]
  %v50 = vunpack.c.l.b16 %v42
  %v51 = vunpack.c.h.b16 %v42
  %v52 = vunpack.c.l.b16 %v43
  %v53 = vunpack.c.h.b16 %v43
  %v54 = vunpack.c.l.b16 %v44
  %v55 = vunpack.c.h.b16 %v44
  %v56 = vunpack.c.l.b16 %v45
  %v57 = vunpack.c.h.b16 %v45
  %v58 = vpack.c.b16 %v52, %v50
  %v59 = vpack.c.b16 %v53, %v51
  %v60 = vpack.c.b16 %v56, %v54
  %v61 = vpack.c.b16 %v57, %v55
  %v91 = vunpack.c.l.b16 %v15
  %v92 = vunpack.c.l.b16 %v16
  %v93 = vunpack.c.l.b16 %v17
  %v94 = vunpack.c.l.b16 %v18
  %v95 = vunpack.c.l.b16 %v19
  %v96 = vunpack.c.l.b16 %v20
  %v97 = vunpack.c.l.b16 %v21
  %v98 = vunpack.c.l.b16 %v22
  %v99 = vunpack.c.l.b16 %v23
  %v100 = vunpack.c.l.b16 %v24
  %v101 = vunpack.c.l.b16 %v25
  %v102 = vunpack.c.l.b16 %v26
  %v103 = vunpack.c.l.b16 %v27
  %v104 = vunpack.c.l.b16 %v28
  %v105 = vunpack.c.l.b16 %v29
  %v106 = vunpack.c.l.b16 %v30
  %v107 = vunpack.c.l.b16 %v31
  %v108 = vunpack.c.l.b16 %v32
  %v109 = vunpack.c.l.b16 %v33
  %v110 = vunpack.c.l.b16 %v34
  %v111 = vunpack.c.l.b16 %v35
  %v112 = vunpack.c.l.b16 %v36
  %v113 = vunpack.c.l.b16 %v37
  %v114 = vunpack.c.l.b16 %v38
  %v115 = vunpack.c.l.b16 %v39
  %v116 = vunpack.c.l.b16 %v40
  %v117 = vunpack.c.l.b16 %v41
  %v118 = vpack.c.b16 %v92, %v91
  %v119 = vpack.c.b16 %v94, %v93
  %v120 = vpack.c.b16 %v96, %v95
  %v121 = vpack.c.b16 %v98, %v97
  %v122 = vpack.c.b16 %v100, %v99
  %v123 = vpack.c.b16 %v102, %v101
  %v124 = vpack.c.b16 %v104, %v103
  %v125 = vpack.c.b16 %v106, %v105
  %v126 = vpack.c.b16 %v108, %v107
  %v127 = vpack.c.b16 %v110, %v109
  %v128 = vpack.c.b16 %v112, %v111
  %v129 = vpack.c.b16 %v114, %v113
  %v130 = vpack.c.b16 %v116, %v115
  %v131 = vpack.c.b16 %v117, %v117
  %vm145 = vcmask 719872
  %v147 = vsel %vm145, %v59, 0
  %v150 = vsel %vm145, %v61, 0
  %vm152 = vcmask 1043456
  %v154 = vsel %vm152, %v131, 0
  %156 = vmatpush.bf16.msra.mxu0 %v125
  %157 = vmatpush.bf16.msra.mxu0 %v124
  %158 = vmatpush.bf16.msra.mxu0 %v123
  %159 = vmatpush.bf16.msra.mxu0 %v122
  %160 = vmatpush.bf16.msra.mxu0 %v121
  %161 = vmatpush.bf16.msra.mxu0 %v120
  %162 = vmatpush.bf16.msra.mxu0 %v119
  %163 = vmatpush.bf16.msra.mxu0 %v118
  %164 = vmatmul.bf16.gmra.mxu0 %v58
  %v165 = vpop.f32.mrf.mxu0
  %v166 = vadd.f32 0.0, %v165
  %v167 = vpop.f32.mrf.mxu0
  %v168 = vadd.f32 0.0, %v167
  %169 = vmatmul.bf16.gmra.mxu0 %v60
  %v170 = vpop.f32.mrf.mxu0
  %v171 = vadd.f32 0.0, %v170
  %v172 = vpop.f32.mrf.mxu0
  %v173 = vadd.f32 0.0, %v172
  %174 = vdwg.mxu0
  %175 = vmatpush.bf16.msra.mxu0 0
  %176 = vmatpush.bf16.msra.mxu0 0
  %177 = vmatpush.bf16.msra.mxu0 %v154
  %178 = vmatpush.bf16.msra.mxu0 %v130
  %179 = vmatpush.bf16.msra.mxu0 %v129
  %180 = vmatpush.bf16.msra.mxu0 %v128
  %181 = vmatpush.bf16.msra.mxu0 %v127
  %182 = vmatpush.bf16.msra.mxu0 %v126
  %183 = vmatmul.bf16.gmra.mxu0 %v147
  %v184 = vpop.f32.mrf.mxu0
  %v185 = vadd.f32 %v166, %v184
  %v186 = vpop.f32.mrf.mxu0
  %v187 = vadd.f32 %v168, %v186
  %188 = vmatmul.bf16.gmra.mxu0 %v150
  %v189 = vpop.f32.mrf.mxu0
  %v190 = vadd.f32 %v171, %v189
  %v191 = vpop.f32.mrf.mxu0
  %v192 = vadd.f32 %v173, %v191
  %193 = vdwg.mxu0
  %s194 = scalar_lea.vmem %s0, 32
  %v195 = vld [vmem:[%s194] sm:$0xff]
  %v196 = vld [vmem:[%s194 + $0x8] sm:$0xff]
  %v197 = vld [vmem:[%s194 + $0x10] sm:$0xff]
  %v198 = vld [vmem:[%s194 + $0x18] sm:$0xff]
  %v203 = vunpack.c.l.b16 %v195
  %v204 = vunpack.c.h.b16 %v195
  %v205 = vunpack.c.l.b16 %v196
  %v206 = vunpack.c.h.b16 %v196
  %v207 = vunpack.c.l.b16 %v197
  %v208 = vunpack.c.h.b16 %v197
  %v209 = vunpack.c.l.b16 %v198
  %v210 = vunpack.c.h.b16 %v198
  %v211 = vpack.c.b16 %v205, %v203
  %v212 = vpack.c.b16 %v206, %v204
  %v213 = vpack.c.b16 %v209, %v207
  %v214 = vpack.c.b16 %v210, %v208
  %v218 = vsel %vm145, %v212, 0
  %v221 = vsel %vm145, %v214, 0
  %223 = vmatpush.bf16.msra.mxu0 %v125
  %224 = vmatpush.bf16.msra.mxu0 %v124
  %225 = vmatpush.bf16.msra.mxu0 %v123
  %226 = vmatpush.bf16.msra.mxu0 %v122
  %227 = vmatpush.bf16.msra.mxu0 %v121
  %228 = vmatpush.bf16.msra.mxu0 %v120
  %229 = vmatpush.bf16.msra.mxu0 %v119
  %230 = vmatpush.bf16.msra.mxu0 %v118
  %231 = vmatmul.bf16.gmra.mxu0 %v211
  %v232 = vpop.f32.mrf.mxu0
  %v233 = vadd.f32 0.0, %v232
  %v234 = vpop.f32.mrf.mxu0
  %v235 = vadd.f32 0.0, %v234
  %236 = vmatmul.bf16.gmra.mxu0 %v213
  %v237 = vpop.f32.mrf.mxu0
  %v238 = vadd.f32 0.0, %v237
  %v239 = vpop.f32.mrf.mxu0
  %v240 = vadd.f32 0.0, %v239
  %241 = vdwg.mxu0
  %242 = vmatpush.bf16.msra.mxu0 0
  %243 = vmatpush.bf16.msra.mxu0 0
  %244 = vmatpush.bf16.msra.mxu0 %v154
  %245 = vmatpush.bf16.msra.mxu0 %v130
  %246 = vmatpush.bf16.msra.mxu0 %v129
  %247 = vmatpush.bf16.msra.mxu0 %v128
  %248 = vmatpush.bf16.msra.mxu0 %v127
  %249 = vmatpush.bf16.msra.mxu0 %v126
  %250 = vmatmul.bf16.gmra.mxu0 %v218
  %v251 = vpop.f32.mrf.mxu0
  %v252 = vadd.f32 %v233, %v251
  %v253 = vpop.f32.mrf.mxu0
  %v254 = vadd.f32 %v235, %v253
  %255 = vmatmul.bf16.gmra.mxu0 %v221
  %v256 = vpop.f32.mrf.mxu0
  %v257 = vadd.f32 %v238, %v256
  %v258 = vpop.f32.mrf.mxu0
  %v259 = vadd.f32 %v240, %v258
  %260 = vdwg.mxu0
  %s261 = scalar_lea.vmem %s0, 64
  %v262 = vld [vmem:[%s261] sm:$0xff]
  %v263 = vld [vmem:[%s261 + $0x8] sm:$0xff]
  %v264 = vld [vmem:[%s261 + $0x10] sm:$0xff]
  %v265 = vld [vmem:[%s261 + $0x18] sm:$0xff]
  %v270 = vunpack.c.l.b16 %v262
  %v271 = vunpack.c.h.b16 %v262
  %v272 = vunpack.c.l.b16 %v263
  %v273 = vunpack.c.h.b16 %v263
  %v274 = vunpack.c.l.b16 %v264
  %v275 = vunpack.c.h.b16 %v264
  %v276 = vunpack.c.l.b16 %v265
  %v277 = vunpack.c.h.b16 %v265
  %v278 = vpack.c.b16 %v272, %v270
  %v279 = vpack.c.b16 %v273, %v271
  %v280 = vpack.c.b16 %v276, %v274
  %v281 = vpack.c.b16 %v277, %v275
  %v285 = vsel %vm145, %v279, 0
  %v288 = vsel %vm145, %v281, 0
  %290 = vmatpush.bf16.msra.mxu0 %v125
  %291 = vmatpush.bf16.msra.mxu0 %v124
  %292 = vmatpush.bf16.msra.mxu0 %v123
  %293 = vmatpush.bf16.msra.mxu0 %v122
  %294 = vmatpush.bf16.msra.mxu0 %v121
  %295 = vmatpush.bf16.msra.mxu0 %v120
  %296 = vmatpush.bf16.msra.mxu0 %v119
  %297 = vmatpush.bf16.msra.mxu0 %v118
  %298 = vmatmul.bf16.gmra.mxu0 %v278
  %v299 = vpop.f32.mrf.mxu0
  %v300 = vadd.f32 0.0, %v299
  %v301 = vpop.f32.mrf.mxu0
  %v302 = vadd.f32 0.0, %v301
  %303 = vmatmul.bf16.gmra.mxu0 %v280
  %v304 = vpop.f32.mrf.mxu0
  %v305 = vadd.f32 0.0, %v304
  %v306 = vpop.f32.mrf.mxu0
  %v307 = vadd.f32 0.0, %v306
  %308 = vdwg.mxu0
  %309 = vmatpush.bf16.msra.mxu0 0
  %310 = vmatpush.bf16.msra.mxu0 0
  %311 = vmatpush.bf16.msra.mxu0 %v154
  %312 = vmatpush.bf16.msra.mxu0 %v130
  %313 = vmatpush.bf16.msra.mxu0 %v129
  %314 = vmatpush.bf16.msra.mxu0 %v128
  %315 = vmatpush.bf16.msra.mxu0 %v127
  %316 = vmatpush.bf16.msra.mxu0 %v126
  %317 = vmatmul.bf16.gmra.mxu0 %v285
  %v318 = vpop.f32.mrf.mxu0
  %v319 = vadd.f32 %v300, %v318
  %v320 = vpop.f32.mrf.mxu0
  %v321 = vadd.f32 %v302, %v320
  %322 = vmatmul.bf16.gmra.mxu0 %v288
  %v323 = vpop.f32.mrf.mxu0
  %v324 = vadd.f32 %v305, %v323
  %v325 = vpop.f32.mrf.mxu0
  %v326 = vadd.f32 %v307, %v325
  %327 = vdwg.mxu0
  %s328 = scalar_lea.vmem %s0, 96
  %v329 = vld [vmem:[%s328] sm:$0xff]
  %v330 = vld [vmem:[%s328 + $0x8] sm:$0xff]
  %v331 = vld [vmem:[%s328 + $0x10] sm:$0xff]
  %v332 = vld [vmem:[%s328 + $0x18] sm:$0xff]
  %v337 = vunpack.c.l.b16 %v329
  %v338 = vunpack.c.h.b16 %v329
  %v339 = vunpack.c.l.b16 %v330
  %v340 = vunpack.c.h.b16 %v330
  %v341 = vunpack.c.l.b16 %v331
  %v342 = vunpack.c.h.b16 %v331
  %v343 = vunpack.c.l.b16 %v332
  %v344 = vunpack.c.h.b16 %v332
  %v345 = vpack.c.b16 %v339, %v337
  %v346 = vpack.c.b16 %v340, %v338
  %v347 = vpack.c.b16 %v343, %v341
  %v348 = vpack.c.b16 %v344, %v342
  %v352 = vsel %vm145, %v346, 0
  %v355 = vsel %vm145, %v348, 0
  %357 = vmatpush.bf16.msra.mxu0 %v125
  %358 = vmatpush.bf16.msra.mxu0 %v124
  %359 = vmatpush.bf16.msra.mxu0 %v123
  %360 = vmatpush.bf16.msra.mxu0 %v122
  %361 = vmatpush.bf16.msra.mxu0 %v121
  %362 = vmatpush.bf16.msra.mxu0 %v120
  %363 = vmatpush.bf16.msra.mxu0 %v119
  %364 = vmatpush.bf16.msra.mxu0 %v118
  %365 = vmatmul.bf16.gmra.mxu0 %v345
  %v366 = vpop.f32.mrf.mxu0
  %v367 = vadd.f32 0.0, %v366
  %v368 = vpop.f32.mrf.mxu0
  %v369 = vadd.f32 0.0, %v368
  %370 = vmatmul.bf16.gmra.mxu0 %v347
  %v371 = vpop.f32.mrf.mxu0
  %v372 = vadd.f32 0.0, %v371
  %v373 = vpop.f32.mrf.mxu0
  %v374 = vadd.f32 0.0, %v373
  %375 = vdwg.mxu0
  %376 = vmatpush.bf16.msra.mxu0 0
  %377 = vmatpush.bf16.msra.mxu0 0
  %378 = vmatpush.bf16.msra.mxu0 %v154
  %379 = vmatpush.bf16.msra.mxu0 %v130
  %380 = vmatpush.bf16.msra.mxu0 %v129
  %381 = vmatpush.bf16.msra.mxu0 %v128
  %382 = vmatpush.bf16.msra.mxu0 %v127
  %383 = vmatpush.bf16.msra.mxu0 %v126
  %384 = vmatmul.bf16.gmra.mxu0 %v352
  %v385 = vpop.f32.mrf.mxu0
  %v386 = vadd.f32 %v367, %v385
  %v387 = vpop.f32.mrf.mxu0
  %v388 = vadd.f32 %v369, %v387
  %389 = vmatmul.bf16.gmra.mxu0 %v355
  %v390 = vpop.f32.mrf.mxu0
  %v391 = vadd.f32 %v372, %v390
  %v392 = vpop.f32.mrf.mxu0
  %v393 = vadd.f32 %v374, %v392
  %394 = vdwg.mxu0
  %v395 = vmax.f32 %v185, %v252
  %v396 = vmax.f32 %v187, %v254
  %v397 = vmax.f32 %v190, %v257
  %v398 = vmax.f32 %v192, %v259
  %v399 = vmax.f32 %v319, %v386
  %v400 = vmax.f32 %v321, %v388
  %v401 = vmax.f32 %v324, %v391
  %v402 = vmax.f32 %v326, %v393
  %v403 = vmax.f32 %v395, %v399
  %v404 = vmax.f32 %v396, %v400
  %v405 = vmax.f32 %v397, %v401
  %v406 = vmax.f32 %v398, %v402
  %v407 = vld [vmem:[%s2] sm:$0x1]
  %v409 = vperm.slane %v407, 0
  %v411 = vadd.f32 %v403, %v409
  %v412 = vadd.f32 %v404, %v409
  %v413 = vadd.f32 %v405, %v409
  %v414 = vadd.f32 %v406, %v409
  %v415 = vmax.f32 %v411, 0.0
  %v416 = vmax.f32 %v412, 0.0
  %v417 = vmax.f32 %v413, 0.0
  %v418 = vmax.f32 %v414, 0.0
  %v419 = vpack.c.bf16 %v415, %v415
  %v420 = vpack.c.bf16 %v416, %v416
  %v421 = vpack.c.bf16 %v417, %v417
  %v422 = vpack.c.bf16 %v418, %v418
  %vm423 = vcmask 388096
  %424 = vst.msk [vmem:[%s3] sm:$0xf] %vm423, %v419
  %425 = vst.msk [vmem:[%s3 + $0x4] sm:$0xf] %vm423, %v420
  %426 = vst.msk [vmem:[%s3 + $0x8] sm:$0xf] %vm423, %v421
  %427 = vst.msk [vmem:[%s3 + $0xc] sm:$0xf] %vm423, %v422
  // Predicated region
  $region14: #{net_forward.4} parent=0 // pred_check
    _
  $region15: #{net_forward.4} parent=0 // pred_check_branch
    %429 = sbr.rel (0) target = $region17
  $region16: #{net_forward.4} parent=0 // pred_region
    _
  $region17: #{net_forward.4} parent=0 // pred_fallthru
    _
  // Predicated region
  $region18: #{net_forward.4} parent=0 // pred_check
    _
  $region19: #{net_forward.4} parent=0 // pred_check_branch
    %431 = sbr.rel (0) target = $region21
  $region20: #{net_forward.4} parent=0 // pred_region
    _
  $region21: #{net_forward.4} parent=0 // pred_fallthru
    _

// kernel: net_forward.5
$region0: #{net_forward.5}
  #allocation0 [shape = 'u32[]', space=smem, size = 0x4, offset = 0x4, fixed_abs, tag = 'smem constant byte address 0x4 - core index']
  #allocation1 [shape = 'u32[72,128]{1,0:T(1,128)}', space=vmem, size = 0x9000, scoped, tag = 'internal scratch']
  %s0 = inlined_call_operand.vmem [shape: bf16[2,768], index: 0, kind: input, shape index: {}]
  %s1 = inlined_call_operand.vmem [shape: bf16[768,128], index: 1, kind: input, shape index: {}]
  %s2 = inlined_call_operand.vmem [shape: f32[1,128], index: 2, kind: input, shape index: {}]
  %s3 = inlined_call_operand.vmem [shape: f32[128,10], index: 3, kind: input, shape index: {}]
  %s4 = inlined_call_operand.vmem [shape: f32[1,10], index: 4, kind: input, shape index: {}]
  %s5 = inlined_call_operand.hbm [shape: f32[2,10], index: 5, kind: output, shape index: {}]
  %s6 = sld [smem:[#allocation0]]
  $region30: #{net_forward.5} parent=0
    _
  %s8 = ssub.s32 1, %s6
  %s9 = scalar_select 0, %s8, %s6
  $region1: #{net_forward.5} parent=0
    #allocation2 [shape = 'u8[1024]{0}', space=vmem, size = 0x400, scoped, tag = 'output window, operand 0, single buffered']
    #allocation3 [shape = 's32[1]{0}', space=sflag, size = 0x4, scoped, tag = 'scoped memory for net_forward.5']
    %10 = vsyncpa [#allocation3], 0
    // Predicated region
    $region2: #{net_forward.5} parent=1 // pred_check
      _
    $region3: #{net_forward.5} parent=1 // pred_check_branch
      %12 = sbr.rel (0) target = $region5
    $region4: #{net_forward.5} parent=1 // pred_region
      _
    $region5: #{net_forward.5} parent=1 // pred_fallthru
      _
    // Predicated region
    $region6: #{net_forward.5} parent=1 // pred_check
      _
    $region7: #{net_forward.5} parent=1 // pred_check_branch
      %14 = sbr.rel (0) target = $region9
    $region8: #{net_forward.5} parent=1 // pred_region
      _
    $region9: #{net_forward.5} parent=1 // pred_fallthru
      _
    // Predicated region
    $region10: #{net_forward.5} parent=1 // pred_check
      _
    $region11: #{net_forward.5} parent=1 // pred_check_branch
      %16 = sbr.rel (0) target = $region13
    $region12: #{net_forward.5} parent=1 // pred_region
      _
    $region13: #{net_forward.5} parent=1 // pred_fallthru
      _
    // Predicated region
    $region14: #{net_forward.5} parent=1 // pred_check
      _
    $region15: #{net_forward.5} parent=1 // pred_check_branch
      %18 = sbr.rel (0) target = $region17
    $region16: #{net_forward.5} parent=1 // pred_region
      _
    $region17: #{net_forward.5} parent=1 // pred_fallthru
      _
    // Predicated region
    $region18: #{net_forward.5} parent=1 // pred_check
      _
    $region19: #{net_forward.5} parent=1 // pred_check_branch
      %20 = sbr.rel (0) target = $region21
    $region20: #{net_forward.5} parent=1 // pred_region
      _
    $region21: #{net_forward.5} parent=1 // pred_fallthru
      _
    %v21 = vld [vmem:[%s0] sm:$0x3f]
    %v22 = vld [vmem:[%s1] sm:$0xf]
    %v23 = vld [vmem:[%s1 + $0x4] sm:$0xf]
    %v24 = vld [vmem:[%s1 + $0x8] sm:$0xf]
    %v25 = vld [vmem:[%s1 + $0xc] sm:$0xf]
    %v26 = vld [vmem:[%s1 + $0x10] sm:$0xf]
    %v27 = vld [vmem:[%s1 + $0x14] sm:$0xf]
    %v28 = vld [vmem:[%s1 + $0x18] sm:$0xf]
    %v29 = vld [vmem:[%s1 + $0x1c] sm:$0xf]
    %v30 = vld [vmem:[%s1 + $0x20] sm:$0xf]
    %v31 = vld [vmem:[%s1 + $0x24] sm:$0xf]
    %v32 = vld [vmem:[%s1 + $0x28] sm:$0xf]
    %v33 = vld [vmem:[%s1 + $0x2c] sm:$0xf]
    %v34 = vld [vmem:[%s1 + $0x30] sm:$0xf]
    %v35 = vld [vmem:[%s1 + $0x34] sm:$0xf]
    %v36 = vld [vmem:[%s1 + $0x38] sm:$0xf]
    %v37 = vld [vmem:[%s1 + $0x3c] sm:$0xf]
    %v38 = vld [vmem:[%s1 + $0x40] sm:$0xf]
    %v39 = vld [vmem:[%s1 + $0x44] sm:$0xf]
    %v40 = vld [vmem:[%s1 + $0x48] sm:$0xf]
    %v41 = vld [vmem:[%s1 + $0x4c] sm:$0xf]
    %v42 = vld [vmem:[%s1 + $0x50] sm:$0xf]
    %v43 = vld [vmem:[%s1 + $0x54] sm:$0xf]
    %v44 = vld [vmem:[%s1 + $0x58] sm:$0xf]
    %v45 = vld [vmem:[%s1 + $0x5c] sm:$0xf]
    %v46 = vld [vmem:[%s1 + $0x60] sm:$0xf]
    %v47 = vld [vmem:[%s1 + $0x64] sm:$0xf]
    %v48 = vld [vmem:[%s1 + $0x68] sm:$0xf]
    %v49 = vld [vmem:[%s1 + $0x6c] sm:$0xf]
    %v50 = vld [vmem:[%s1 + $0x70] sm:$0xf]
    %v51 = vld [vmem:[%s1 + $0x74] sm:$0xf]
    %v52 = vld [vmem:[%s1 + $0x78] sm:$0xf]
    %v53 = vld [vmem:[%s1 + $0x7c] sm:$0xf]
    %v54 = vld [vmem:[%s1 + $0x80] sm:$0xf]
    %v55 = vld [vmem:[%s1 + $0x84] sm:$0xf]
    %v56 = vld [vmem:[%s1 + $0x88] sm:$0xf]
    %v57 = vld [vmem:[%s1 + $0x8c] sm:$0xf]
    %v58 = vld [vmem:[%s1 + $0x90] sm:$0xf]
    %v59 = vld [vmem:[%s1 + $0x94] sm:$0xf]
    %v60 = vld [vmem:[%s1 + $0x98] sm:$0xf]
    %v61 = vld [vmem:[%s1 + $0x9c] sm:$0xf]
    %v62 = vld [vmem:[%s1 + $0xa0] sm:$0xf]
    %v63 = vld [vmem:[%s1 + $0xa4] sm:$0xf]
    %v64 = vld [vmem:[%s1 + $0xa8] sm:$0xf]
    %v65 = vld [vmem:[%s1 + $0xac] sm:$0xf]
    %v66 = vld [vmem:[%s1 + $0xb0] sm:$0xf]
    %v67 = vld [vmem:[%s1 + $0xb4] sm:$0xf]
    %v68 = vld [vmem:[%s1 + $0xb8] sm:$0xf]
    %v69 = vld [vmem:[%s1 + $0xbc] sm:$0xf]
    %v70 = vld [vmem:[%s1 + $0xc0] sm:$0xf]
    %v71 = vld [vmem:[%s1 + $0xc4] sm:$0xf]
    %v72 = vld [vmem:[%s1 + $0xc8] sm:$0xf]
    %v73 = vld [vmem:[%s1 + $0xcc] sm:$0xf]
    %v74 = vld [vmem:[%s1 + $0xd0] sm:$0xf]
    %v75 = vld [vmem:[%s1 + $0xd4] sm:$0xf]
    %v76 = vld [vmem:[%s1 + $0xd8] sm:$0xf]
    %v77 = vld [vmem:[%s1 + $0xdc] sm:$0xf]
    %v78 = vld [vmem:[%s1 + $0xe0] sm:$0xf]
    %v79 = vld [vmem:[%s1 + $0xe4] sm:$0xf]
    %v80 = vld [vmem:[%s1 + $0xe8] sm:$0xf]
    %v81 = vld [vmem:[%s1 + $0xec] sm:$0xf]
    %v82 = vld [vmem:[%s1 + $0xf0] sm:$0xf]
    %v83 = vld [vmem:[%s1 + $0xf4] sm:$0xf]
    %v84 = vld [vmem:[%s1 + $0xf8] sm:$0xf]
    %v85 = vld [vmem:[%s1 + $0xfc] sm:$0xf]
    %v86 = vld [vmem:[%s1 + $0x100] sm:$0xf]
    %v87 = vld [vmem:[%s1 + $0x104] sm:$0xf]
    %v88 = vld [vmem:[%s1 + $0x108] sm:$0xf]
    %v89 = vld [vmem:[%s1 + $0x10c] sm:$0xf]
    %v90 = vld [vmem:[%s1 + $0x110] sm:$0xf]
    %v91 = vld [vmem:[%s1 + $0x114] sm:$0xf]
    %v92 = vld [vmem:[%s1 + $0x118] sm:$0xf]
    %v93 = vld [vmem:[%s1 + $0x11c] sm:$0xf]
    %v94 = vld [vmem:[%s1 + $0x120] sm:$0xf]
    %v95 = vld [vmem:[%s1 + $0x124] sm:$0xf]
    %v96 = vld [vmem:[%s1 + $0x128] sm:$0xf]
    %v97 = vld [vmem:[%s1 + $0x12c] sm:$0xf]
    %v98 = vld [vmem:[%s1 + $0x130] sm:$0xf]
    %v99 = vld [vmem:[%s1 + $0x134] sm:$0xf]
    %v100 = vld [vmem:[%s1 + $0x138] sm:$0xf]
    %v101 = vld [vmem:[%s1 + $0x13c] sm:$0xf]
    %v102 = vld [vmem:[%s1 + $0x140] sm:$0xf]
    %v103 = vld [vmem:[%s1 + $0x144] sm:$0xf]
    %v104 = vld [vmem:[%s1 + $0x148] sm:$0xf]
    %v105 = vld [vmem:[%s1 + $0x14c] sm:$0xf]
    %v106 = vld [vmem:[%s1 + $0x150] sm:$0xf]
    %v107 = vld [vmem:[%s1 + $0x154] sm:$0xf]
    %v108 = vld [vmem:[%s1 + $0x158] sm:$0xf]
    %v109 = vld [vmem:[%s1 + $0x15c] sm:$0xf]
    %v110 = vld [vmem:[%s1 + $0x160] sm:$0xf]
    %v111 = vld [vmem:[%s1 + $0x164] sm:$0xf]
    %v112 = vld [vmem:[%s1 + $0x168] sm:$0xf]
    %v113 = vld [vmem:[%s1 + $0x16c] sm:$0xf]
    %v114 = vld [vmem:[%s1 + $0x170] sm:$0xf]
    %v115 = vld [vmem:[%s1 + $0x174] sm:$0xf]
    %v116 = vld [vmem:[%s1 + $0x178] sm:$0xf]
    %v117 = vld [vmem:[%s1 + $0x17c] sm:$0xf]
    %v118 = vld [vmem:[%s2] sm:$0x1]
    %v120 = vperm.slane %v118, 0
    %123 = vst [vmem:[#allocation1] ss:$9 sm:$0xff] %v21
    %v124 = vld [vmem:[#allocation1] sm:$0xff]
    %v125 = vld [vmem:[#allocation1 + $0x9] sm:$0xff]
    %v126 = vld [vmem:[#allocation1 + $0x12] sm:$0xff]
    %v127 = vld [vmem:[#allocation1 + $0x1b] sm:$0xff]
    %v128 = vld [vmem:[#allocation1 + $0x24] sm:$0xff]
    %v129 = vld [vmem:[#allocation1 + $0x2d] sm:$0xff]
    %v232 = vunpack.c.l.b16 %v22
    %v233 = vunpack.c.l.b16 %v23
    %v234 = vunpack.c.l.b16 %v24
    %v235 = vunpack.c.l.b16 %v25
    %v236 = vunpack.c.l.b16 %v26
    %v237 = vunpack.c.l.b16 %v27
    %v238 = vunpack.c.l.b16 %v28
    %v239 = vunpack.c.l.b16 %v29
    %v240 = vunpack.c.l.b16 %v30
    %v241 = vunpack.c.l.b16 %v31
    %v242 = vunpack.c.l.b16 %v32
    %v243 = vunpack.c.l.b16 %v33
    %v244 = vunpack.c.l.b16 %v34
    %v245 = vunpack.c.l.b16 %v35
    %v246 = vunpack.c.l.b16 %v36
    %v247 = vunpack.c.l.b16 %v37
    %v248 = vunpack.c.l.b16 %v38
    %v249 = vunpack.c.l.b16 %v39
    %v250 = vunpack.c.l.b16 %v40
    %v251 = vunpack.c.l.b16 %v41
    %v252 = vunpack.c.l.b16 %v42
    %v253 = vunpack.c.l.b16 %v43
    %v254 = vunpack.c.l.b16 %v44
    %v255 = vunpack.c.l.b16 %v45
    %v256 = vunpack.c.l.b16 %v46
    %v257 = vunpack.c.l.b16 %v47
    %v258 = vunpack.c.l.b16 %v48
    %v259 = vunpack.c.l.b16 %v49
    %v260 = vunpack.c.l.b16 %v50
    %v261 = vunpack.c.l.b16 %v51
    %v262 = vunpack.c.l.b16 %v52
    %v263 = vunpack.c.l.b16 %v53
    %v264 = vunpack.c.l.b16 %v54
    %v265 = vunpack.c.l.b16 %v55
    %v266 = vunpack.c.l.b16 %v56
    %v267 = vunpack.c.l.b16 %v57
    %v268 = vunpack.c.l.b16 %v58
    %v269 = vunpack.c.l.b16 %v59
    %v270 = vunpack.c.l.b16 %v60
    %v271 = vunpack.c.l.b16 %v61
    %v272 = vunpack.c.l.b16 %v62
    %v273 = vunpack.c.l.b16 %v63
    %v274 = vunpack.c.l.b16 %v64
    %v275 = vunpack.c.l.b16 %v65
    %v276 = vunpack.c.l.b16 %v66
    %v277 = vunpack.c.l.b16 %v67
    %v278 = vunpack.c.l.b16 %v68
    %v279 = vunpack.c.l.b16 %v69
    %v280 = vunpack.c.l.b16 %v70
    %v281 = vunpack.c.l.b16 %v71
    %v282 = vunpack.c.l.b16 %v72
    %v283 = vunpack.c.l.b16 %v73
    %v284 = vunpack.c.l.b16 %v74
    %v285 = vunpack.c.l.b16 %v75
    %v286 = vunpack.c.l.b16 %v76
    %v287 = vunpack.c.l.b16 %v77
    %v288 = vunpack.c.l.b16 %v78
    %v289 = vunpack.c.l.b16 %v79
    %v290 = vunpack.c.l.b16 %v80
    %v291 = vunpack.c.l.b16 %v81
    %v292 = vunpack.c.l.b16 %v82
    %v293 = vunpack.c.l.b16 %v83
    %v294 = vunpack.c.l.b16 %v84
    %v295 = vunpack.c.l.b16 %v85
    %v296 = vunpack.c.l.b16 %v86
    %v297 = vunpack.c.l.b16 %v87
    %v298 = vunpack.c.l.b16 %v88
    %v299 = vunpack.c.l.b16 %v89
    %v300 = vunpack.c.l.b16 %v90
    %v301 = vunpack.c.l.b16 %v91
    %v302 = vunpack.c.l.b16 %v92
    %v303 = vunpack.c.l.b16 %v93
    %v304 = vunpack.c.l.b16 %v94
    %v305 = vunpack.c.l.b16 %v95
    %v306 = vunpack.c.l.b16 %v96
    %v307 = vunpack.c.l.b16 %v97
    %v308 = vunpack.c.l.b16 %v98
    %v309 = vunpack.c.l.b16 %v99
    %v310 = vunpack.c.l.b16 %v100
    %v311 = vunpack.c.l.b16 %v101
    %v312 = vunpack.c.l.b16 %v102
    %v313 = vunpack.c.l.b16 %v103
    %v314 = vunpack.c.l.b16 %v104
    %v315 = vunpack.c.l.b16 %v105
    %v316 = vunpack.c.l.b16 %v106
    %v317 = vunpack.c.l.b16 %v107
    %v318 = vunpack.c.l.b16 %v108
    %v319 = vunpack.c.l.b16 %v109
    %v320 = vunpack.c.l.b16 %v110
    %v321 = vunpack.c.l.b16 %v111
    %v322 = vunpack.c.l.b16 %v112
    %v323 = vunpack.c.l.b16 %v113
    %v324 = vunpack.c.l.b16 %v114
    %v325 = vunpack.c.l.b16 %v115
    %v326 = vunpack.c.l.b16 %v116
    %v327 = vunpack.c.l.b16 %v117
    %v328 = vpack.c.b16 %v233, %v232
    %v329 = vpack.c.b16 %v235, %v234
    %v330 = vpack.c.b16 %v237, %v236
    %v331 = vpack.c.b16 %v239, %v238
    %v332 = vpack.c.b16 %v241, %v240
    %v333 = vpack.c.b16 %v243, %v242
    %v334 = vpack.c.b16 %v245, %v244
    %v335 = vpack.c.b16 %v247, %v246
    %v336 = vpack.c.b16 %v249, %v248
    %v337 = vpack.c.b16 %v251, %v250
    %v338 = vpack.c.b16 %v253, %v252
    %v339 = vpack.c.b16 %v255, %v254
    %v340 = vpack.c.b16 %v257, %v256
    %v341 = vpack.c.b16 %v259, %v258
    %v342 = vpack.c.b16 %v261, %v260
    %v343 = vpack.c.b16 %v263, %v262
    %v344 = vpack.c.b16 %v265, %v264
    %v345 = vpack.c.b16 %v267, %v266
    %v346 = vpack.c.b16 %v269, %v268
    %v347 = vpack.c.b16 %v271, %v270
    %v348 = vpack.c.b16 %v273, %v272
    %v349 = vpack.c.b16 %v275, %v274
    %v350 = vpack.c.b16 %v277, %v276
    %v351 = vpack.c.b16 %v279, %v278
    %v352 = vpack.c.b16 %v281, %v280
    %v353 = vpack.c.b16 %v283, %v282
    %v354 = vpack.c.b16 %v285, %v284
    %v355 = vpack.c.b16 %v287, %v286
    %v356 = vpack.c.b16 %v289, %v288
    %v357 = vpack.c.b16 %v291, %v290
    %v358 = vpack.c.b16 %v293, %v292
    %v359 = vpack.c.b16 %v295, %v294
    %v360 = vpack.c.b16 %v297, %v296
    %v361 = vpack.c.b16 %v299, %v298
    %v362 = vpack.c.b16 %v301, %v300
    %v363 = vpack.c.b16 %v303, %v302
    %v364 = vpack.c.b16 %v305, %v304
    %v365 = vpack.c.b16 %v307, %v306
    %v366 = vpack.c.b16 %v309, %v308
    %v367 = vpack.c.b16 %v311, %v310
    %v368 = vpack.c.b16 %v313, %v312
    %v369 = vpack.c.b16 %v315, %v314
    %v370 = vpack.c.b16 %v317, %v316
    %v371 = vpack.c.b16 %v319, %v318
    %v372 = vpack.c.b16 %v321, %v320
    %v373 = vpack.c.b16 %v323, %v322
    %v374 = vpack.c.b16 %v325, %v324
    %v375 = vpack.c.b16 %v327, %v326
    %424 = vmatpush.bf16.msra.mxu0 %v335
    %425 = vmatpush.bf16.msra.mxu0 %v334
    %426 = vmatpush.bf16.msra.mxu0 %v333
    %427 = vmatpush.bf16.msra.mxu0 %v332
    %428 = vmatpush.bf16.msra.mxu0 %v331
    %429 = vmatpush.bf16.msra.mxu0 %v330
    %430 = vmatpush.bf16.msra.mxu0 %v329
    %431 = vmatpush.bf16.msra.mxu0 %v328
    %432 = vmatmul.bf16.gmra.mxu0 %v124
    %v433 = vpop.f32.mrf.mxu0
    %v434 = vadd.f32 %v120, %v433
    %v435 = vpop.f32.mrf.mxu0
    %436 = vdwg.mxu0
    %437 = vmatpush.bf16.msra.mxu0 %v343
    %438 = vmatpush.bf16.msra.mxu0 %v342
    %439 = vmatpush.bf16.msra.mxu0 %v341
    %440 = vmatpush.bf16.msra.mxu0 %v340
    %441 = vmatpush.bf16.msra.mxu0 %v339
    %442 = vmatpush.bf16.msra.mxu0 %v338
    %443 = vmatpush.bf16.msra.mxu0 %v337
    %444 = vmatpush.bf16.msra.mxu0 %v336
    %445 = vmatmul.bf16.gmra.mxu0 %v125
    %v446 = vpop.f32.mrf.mxu0
    %v447 = vadd.f32 %v434, %v446
    %v448 = vpop.f32.mrf.mxu0
    %449 = vdwg.mxu0
    %450 = vmatpush.bf16.msra.mxu0 %v351
    %451 = vmatpush.bf16.msra.mxu0 %v350
    %452 = vmatpush.bf16.msra.mxu0 %v349
    %453 = vmatpush.bf16.msra.mxu0 %v348
    %454 = vmatpush.bf16.msra.mxu0 %v347
    %455 = vmatpush.bf16.msra.mxu0 %v346
    %456 = vmatpush.bf16.msra.mxu0 %v345
    %457 = vmatpush.bf16.msra.mxu0 %v344
    %458 = vmatmul.bf16.gmra.mxu0 %v126
    %v459 = vpop.f32.mrf.mxu0
    %v460 = vadd.f32 %v447, %v459
    %v461 = vpop.f32.mrf.mxu0
    %462 = vdwg.mxu0
    %463 = vmatpush.bf16.msra.mxu0 %v359
    %464 = vmatpush.bf16.msra.mxu0 %v358
    %465 = vmatpush.bf16.msra.mxu0 %v357
    %466 = vmatpush.bf16.msra.mxu0 %v356
    %467 = vmatpush.bf16.msra.mxu0 %v355
    %468 = vmatpush.bf16.msra.mxu0 %v354
    %469 = vmatpush.bf16.msra.mxu0 %v353
    %470 = vmatpush.bf16.msra.mxu0 %v352
    %471 = vmatmul.bf16.gmra.mxu0 %v127
    %v472 = vpop.f32.mrf.mxu0
    %v473 = vadd.f32 %v460, %v472
    %v474 = vpop.f32.mrf.mxu0
    %475 = vdwg.mxu0
    %476 = vmatpush.bf16.msra.mxu0 %v367
    %477 = vmatpush.bf16.msra.mxu0 %v366
    %478 = vmatpush.bf16.msra.mxu0 %v365
    %479 = vmatpush.bf16.msra.mxu0 %v364
    %480 = vmatpush.bf16.msra.mxu0 %v363
    %481 = vmatpush.bf16.msra.mxu0 %v362
    %482 = vmatpush.bf16.msra.mxu0 %v361
    %483 = vmatpush.bf16.msra.mxu0 %v360
    %484 = vmatmul.bf16.gmra.mxu0 %v128
    %v485 = vpop.f32.mrf.mxu0
    %v486 = vadd.f32 %v473, %v485
    %v487 = vpop.f32.mrf.mxu0
    %488 = vdwg.mxu0
    %489 = vmatpush.bf16.msra.mxu0 %v375
    %490 = vmatpush.bf16.msra.mxu0 %v374
    %491 = vmatpush.bf16.msra.mxu0 %v373
    %492 = vmatpush.bf16.msra.mxu0 %v372
    %493 = vmatpush.bf16.msra.mxu0 %v371
    %494 = vmatpush.bf16.msra.mxu0 %v370
    %495 = vmatpush.bf16.msra.mxu0 %v369
    %496 = vmatpush.bf16.msra.mxu0 %v368
    %497 = vmatmul.bf16.gmra.mxu0 %v129
    %v498 = vpop.f32.mrf.mxu0
    %v499 = vadd.f32 %v486, %v498
    %v500 = vpop.f32.mrf.mxu0
    %501 = vdwg.mxu0
    %v502 = vmax.f32 %v499, 0.0
    %v503 = vld [vmem:[%s3] sm:$0xff]
    %v504 = vld [vmem:[%s3 + $0x8] sm:$0xff]
    %v505 = vld [vmem:[%s3 + $0x10] sm:$0xff]
    %v506 = vld [vmem:[%s3 + $0x18] sm:$0xff]
    %v507 = vld [vmem:[%s3 + $0x20] sm:$0xff]
    %v508 = vld [vmem:[%s3 + $0x28] sm:$0xff]
    %v509 = vld [vmem:[%s3 + $0x30] sm:$0xff]
    %v510 = vld [vmem:[%s3 + $0x38] sm:$0xff]
    %v511 = vld [vmem:[%s3 + $0x40] sm:$0xff]
    %v512 = vld [vmem:[%s3 + $0x48] sm:$0xff]
    %v513 = vld [vmem:[%s3 + $0x50] sm:$0xff]
    %v514 = vld [vmem:[%s3 + $0x58] sm:$0xff]
    %v515 = vld [vmem:[%s3 + $0x60] sm:$0xff]
    %v516 = vld [vmem:[%s3 + $0x68] sm:$0xff]
    %v517 = vld [vmem:[%s3 + $0x70] sm:$0xff]
    %v518 = vld [vmem:[%s3 + $0x78] sm:$0xff]
    %v519 = vld [vmem:[%s4] sm:$0x1]
    %v521 = vperm.slane %v519, 0
    %523 = vmatpush.msra.mxu0 %v518
    %524 = vmatpush.msra.mxu0 %v517
    %525 = vmatpush.msra.mxu0 %v516
    %526 = vmatpush.msra.mxu0 %v515
    %527 = vmatpush.msra.mxu0 %v514
    %528 = vmatpush.msra.mxu0 %v513
    %529 = vmatpush.msra.mxu0 %v512
    %530 = vmatpush.msra.mxu0 %v511
    %531 = vmatpush.msra.mxu0 %v510
    %532 = vmatpush.msra.mxu0 %v509
    %533 = vmatpush.msra.mxu0 %v508
    %534 = vmatpush.msra.mxu0 %v507
    %535 = vmatpush.msra.mxu0 %v506
    %536 = vmatpush.msra.mxu0 %v505
    %537 = vmatpush.msra.mxu0 %v504
    %538 = vmatpush.msra.mxu0 %v503
    %539 = vmatmul.f32.gmra.mxu0 %v502
    %v540 = vpop.f32.mrf.mxu0
    %v541 = vadd.f32 %v521, %v540
    %542 = vdwg.mxu0
    %vm543 = vcmask 74752
    %v544 = vsel %vm543, %v541, -inf
    %545 = vmax.xlane.f32.xlu0 %v544
    %v546 = vpop.xlane.xlu0 %545
    %v547 = vsub.f32 %v541, %v546
    %v548 = vmul.f32 %v547, 1.442695
    %v549 = vpow.pop %v548
    %v550 = vsel %vm543, %v549, 0.0
    %551 = vadd.xlane.f32.xlu0 %v550
    %v552 = vpop.xlane.xlu0 %551
    %v553 = vlog2.pop %v552
    %v554 = vmul.f32 %v553, 0.6931472
    %v555 = vadd.f32 %v554, %v546
    %v556 = vsub.f32 %v541, %v555
    %557 = vst.msk [vmem:[#allocation2] sm:$0x3] %vm543, %v556
    // Predicated region
    $region22: #{net_forward.5} parent=1 // pred_check
      _
    $region23: #{net_forward.5} parent=1 // pred_check_branch
      %559 = sbr.rel (0) target = $region25
    $region24: #{net_forward.5} parent=1 // pred_region
      %561 = vsyncadd [#allocation3], 0
      %s563 = sshll.u32 [#allocation2], 4
      %s564 = int_to_ptr.vmem [resolvable:$true] %s563
      %s565 = sshll.u32 %s5, 4
      %s566 = int_to_ptr.hbm [resolvable:$true] %s565
      %568 = dma.vmem_to_hbm [thread:$0]  %s564, 32, %s566, [#allocation3]
    $region25: #{net_forward.5} parent=1 // pred_fallthru
      _
    // Predicated region
    $region26: #{net_forward.5} parent=1 // pred_check
      _
    $region27: #{net_forward.5} parent=1 // pred_check_branch
      %570 = sbr.rel (0) target = $region29
    $region28: #{net_forward.5} parent=1 // pred_region
      %572 = dma.done [#allocation3], 32
    $region29: #{net_forward.5} parent=1 // pred_fallthru
      _
    %573 = vsyncpa [#allocation3], 1

</llo_original>
